<compile_context>
chip_gen: v6e
topology: v6e:2x2x1
jax: 0.10.0
libtpu: 0.0.40
codegen_flags: <defaults>
</compile_context>

<pallas_src>
import functools
import math

import jax
import jax.numpy as jnp
from jax.experimental import pallas as pl
from jax.experimental.pallas import tpu as pltpu

LOG2 = math.log(2.0)


def _shifted_softplus(v):
    # modelforge ShiftedSoftplus: softplus(x) - log(2)
    return jax.nn.softplus(v) - LOG2


def _round_up(x, m):
    return ((x + m - 1) // m) * m


def _pad2(a, rows, cols):
    return jnp.pad(a, ((0, rows - a.shape[0]), (0, cols - a.shape[1])))


# ---------------------------------------------------------------------------
# Kernel 1: pair-streamed message passing.
#   xs[i] += sum_{p: idx_i[p]==i} xf[idx_j[p]] * (filter_net(f_ij[p]) * cutoff[p])
# grid = (pair_splits, pair_tiles).  Leading axis is "parallel" (one partial
# accumulator block per split -> both TCs on v7x); trailing axis is the
# "arbitrary" pair reduction, accumulated into the resident output block.
# ---------------------------------------------------------------------------
def _pair_scatter_kernel(atom_chunk,
                         xf_ref, idx_i_ref, idx_j_ref, f_ij_ref, cut_ref,
                         wf1_ref, bf1_ref, wf2_ref, bf2_ref,
                         xs_ref):
    p = pl.program_id(1)
    n_pad, nf = xs_ref.shape
    tp = f_ij_ref.shape[0]
    n_chunks = n_pad // atom_chunk

    @pl.when(p == 0)
    def _init():
        xs_ref[...] = jnp.zeros_like(xs_ref)

    # ---- filter network on this pair tile: [TP, n_rbf] -> [TP, NF] ---------
    h = jnp.dot(f_ij_ref[...], wf1_ref[...],
                preferred_element_type=jnp.float32) + bf1_ref[...]
    h = _shifted_softplus(h)
    w_ij = jnp.dot(h, wf2_ref[...],
                   preferred_element_type=jnp.float32) + bf2_ref[...]
    # Padded pairs have cutoff == 0, so w_ij (hence x_ij) vanishes for them.
    w_ij = w_ij * cut_ref[...]                       # [TP, NF] * [TP, 1]

    idx_j_col = idx_j_ref[...]                       # [TP, 1] int32
    idx_i_row = idx_i_ref[...]                       # [1, TP] int32

    # ---- gather x_j = xf[idx_j] via one-hot matmul on the MXU --------------
    gather_iota = jax.lax.broadcasted_iota(jnp.int32, (tp, atom_chunk), 1)

    def _gather_chunk(c):
        sel_j = (gather_iota + c * atom_chunk == idx_j_col).astype(jnp.float32)
        return jnp.dot(sel_j, xf_ref[c * atom_chunk:(c + 1) * atom_chunk, :],
                       preferred_element_type=jnp.float32)

    x_j = _gather_chunk(0)
    for c in range(1, n_chunks):
        x_j = x_j + _gather_chunk(c)

    x_ij = x_j * w_ij                                # [TP, NF]

    # ---- scatter_add over idx_i: pre-transposed one-hot [C, TP] on MXU -----
    scatter_iota = jax.lax.broadcasted_iota(jnp.int32, (atom_chunk, tp), 0)
    for c in range(n_chunks):
        sel_i = (scatter_iota + c * atom_chunk == idx_i_row).astype(jnp.float32)
        xs_ref[c * atom_chunk:(c + 1) * atom_chunk, :] += jnp.dot(
            sel_i, x_ij, preferred_element_type=jnp.float32)


# ---------------------------------------------------------------------------
# Kernel 2: combine pair-split partials and apply the feature_to_output MLP,
# tiled ("parallel") over atoms so its DMA pipelines independently.
# ---------------------------------------------------------------------------
def _output_mlp_kernel(xs_ref, wo1_ref, bo1_ref, wo2_ref, bo2_ref, out_ref):
    xs = jnp.sum(xs_ref[...], axis=0)                # [S, TA, NF] -> [TA, NF]
    h = jnp.dot(xs, wo1_ref[...],
                preferred_element_type=jnp.float32) + bo1_ref[...]
    h = _shifted_softplus(h)
    out_ref[...] = jnp.dot(h, wo2_ref[...],
                           preferred_element_type=jnp.float32) + bo2_ref[...]


def schnet_interaction(x, pairlist, f_ij, f_ij_cutoff, params,
                       *, tile_pairs=256, pair_splits=2, atom_chunk=256):
    """x: [N, F_atom] f32, pairlist: [2, P] int32, f_ij: [P, 1, n_rbf],
    f_ij_cutoff: [P, 1]."""
    n_atoms, f_atom = x.shape
    n_filters = params["w_in"].shape[1]
    n_rbf = params["wf1"].shape[0]
    n_pairs = pairlist.shape[1]

    FA = _round_up(f_atom, 128)          # padded atom-feature dim (lane-dense)
    NF = _round_up(n_filters, 128)       # padded filter dim (lane-dense)
    TP = _round_up(tile_pairs, 128)      # pair tile

    # Atom padding / chunk size for the one-hot builds and the MLP atom tile.
    if n_atoms <= atom_chunk:
        NP = _round_up(n_atoms, 8)
        C = NP
    else:
        NP = _round_up(n_atoms, atom_chunk)
        C = atom_chunk
    TA = C

    splits = max(1, min(pair_splits, pl.cdiv(max(n_pairs, 1), TP)))
    PP = _round_up(max(n_pairs, 1), splits * TP)
    tiles_per_split = PP // (splits * TP)

    f32 = jnp.float32

    # ---- input_to_feature hoisted out of the pair kernel (plain XLA) -------
    x_p = _pad2(x.astype(f32), NP, FA)
    w_in = _pad2(params["w_in"].astype(f32), FA, NF)
    xf = jnp.dot(x_p, w_in, preferred_element_type=f32)           # [NP, NF]

    # ---- pair-side inputs; padding pairs MUST keep cutoff == 0 -------------
    f_ij_p = _pad2(f_ij.reshape(n_pairs, n_rbf).astype(f32), PP, n_rbf)
    cut_p = _pad2(f_ij_cutoff.reshape(n_pairs, 1).astype(f32), PP, 1)
    idx_i = pairlist[0].astype(jnp.int32)
    idx_j = pairlist[1].astype(jnp.int32)
    idx_i_row = jnp.zeros((1, PP), jnp.int32).at[0, :n_pairs].set(idx_i)
    idx_j_col = jnp.zeros((PP, 1), jnp.int32).at[:n_pairs, 0].set(idx_j)

    # ---- zero-pad weights so padded lanes stay exactly zero ----------------
    wf1 = _pad2(params["wf1"].astype(f32), n_rbf, NF)
    bf1 = _pad2(params["bf1"].reshape(1, -1).astype(f32), 1, NF)
    wf2 = _pad2(params["wf2"].astype(f32), NF, NF)
    bf2 = _pad2(params["bf2"].reshape(1, -1).astype(f32), 1, NF)
    wo1 = _pad2(params["wo1"].astype(f32), NF, FA)
    bo1 = _pad2(params["bo1"].reshape(1, -1).astype(f32), 1, FA)
    wo2 = _pad2(params["wo2"].astype(f32), FA, FA)
    bo2 = _pad2(params["bo2"].reshape(1, -1).astype(f32), 1, FA)

    # ---------------- pair kernel -------------------------------------------
    const2 = lambda s, p: (0, 0)

    def pair_map(s, p):
        return (s * tiles_per_split + p, 0)

    pair_in_specs = [
        pl.BlockSpec((NP, NF), const2),                                  # xf (resident)
        pl.BlockSpec((1, TP), lambda s, p: (0, s * tiles_per_split + p)),  # idx_i
        pl.BlockSpec((TP, 1), pair_map),                                 # idx_j
        pl.BlockSpec((TP, n_rbf), pair_map),                             # f_ij
        pl.BlockSpec((TP, 1), pair_map),                                 # cutoff
        pl.BlockSpec((n_rbf, NF), const2),                               # wf1
        pl.BlockSpec((1, NF), const2),                                   # bf1
        pl.BlockSpec((NF, NF), const2),                                  # wf2
        pl.BlockSpec((1, NF), const2),                                   # bf2
    ]
    # One partial accumulator block per split; constant across the pair axis.
    pair_out_spec = pl.BlockSpec((NP, NF), lambda s, p: (s, 0))

    # VMEM budget from the actual footprint (x2 for double-buffering).
    B = 4
    const_bytes = B * (NP * NF + n_rbf * NF + NF + NF * NF + NF)
    tile_bytes = B * (TP + TP + TP * n_rbf + TP)
    acc_bytes = B * NP * NF
    interm_bytes = B * (4 * TP * NF + 2 * C * TP)
    pair_vmem = 2 * (const_bytes + tile_bytes + acc_bytes) + interm_bytes + (4 << 20)
    pair_vmem = max(int(pair_vmem), 16 << 20)

    xs_flat = pl.pallas_call(
        functools.partial(_pair_scatter_kernel, C),
        out_shape=jax.ShapeDtypeStruct((splits * NP, NF), f32),
        grid_spec=pltpu.PrefetchScalarGridSpec(
            num_scalar_prefetch=0,
            grid=(splits, tiles_per_split),
            in_specs=pair_in_specs,
            out_specs=pair_out_spec,
        ),
        compiler_params=pltpu.CompilerParams(
            dimension_semantics=("parallel", "arbitrary"),
            vmem_limit_bytes=pair_vmem,
        ),
    )(xf, idx_i_row, idx_j_col, f_ij_p, cut_p, wf1, bf1, wf2, bf2)

    xs_parts = xs_flat.reshape(splits, NP, NF)       # free, row-major contiguous

    # ---------------- output MLP kernel --------------------------------------
    atom_tiles = NP // TA
    mlp_const = lambda a: (0, 0)
    mlp_in_specs = [
        pl.BlockSpec((splits, TA, NF), lambda a: (0, a, 0)),
        pl.BlockSpec((NF, FA), mlp_const),
        pl.BlockSpec((1, FA), mlp_const),
        pl.BlockSpec((FA, FA), mlp_const),
        pl.BlockSpec((1, FA), mlp_const),
    ]
    mlp_out_spec = pl.BlockSpec((TA, FA), lambda a: (a, 0))

    mlp_vmem = (2 * B * (splits * TA * NF + NF * FA + FA + FA * FA + FA + TA * FA)
                + B * (2 * TA * NF + 2 * TA * FA) + (4 << 20))
    mlp_vmem = max(int(mlp_vmem), 16 << 20)

    out_pad = pl.pallas_call(
        _output_mlp_kernel,
        out_shape=jax.ShapeDtypeStruct((NP, FA), f32),
        grid_spec=pltpu.PrefetchScalarGridSpec(
            num_scalar_prefetch=0,
            grid=(atom_tiles,),
            in_specs=mlp_in_specs,
            out_specs=mlp_out_spec,
        ),
        compiler_params=pltpu.CompilerParams(
            dimension_semantics=("parallel",),
            vmem_limit_bytes=mlp_vmem,
        ),
    )(xs_parts, wo1, bo1, wo2, bo2)

    return out_pad[:n_atoms, :f_atom]


def _reference(x, pairlist, f_ij, f_ij_cutoff, params):
    idx_i, idx_j = pairlist[0], pairlist[1]
    xf = x @ params["w_in"]
    h = jax.nn.softplus(f_ij.squeeze(1) @ params["wf1"] + params["bf1"]) - LOG2
    w_ij = (h @ params["wf2"] + params["bf2"]) * f_ij_cutoff
    x_ij = xf[idx_j] * w_ij
    xs = jax.ops.segment_sum(x_ij, idx_i, num_segments=x.shape[0])
    h2 = jax.nn.softplus(xs @ params["wo1"] + params["bo1"]) - LOG2
    return h2 @ params["wo2"] + params["bo2"]


if __name__ == "__main__":
    # module hyperparameters (respect the asserts in __init__)
    number_of_atom_features = 32          # > 10
    number_of_filters = 16                # > 1
    number_of_radial_basis_functions = 8  # > 4

    n_atoms = 8
    n_pairs = 16

    key = jax.random.PRNGKey(0)
    keys = jax.random.split(key, 16)

    def w(k, shape, scale=0.1):
        return (scale * jax.random.normal(k, shape)).astype(jnp.float32)

    # Dense weights stored as [in, out] so the kernel does x @ W (+ b).
    params = {
        "w_in": w(keys[0], (number_of_atom_features, number_of_filters)),
        "wf1": w(keys[1], (number_of_radial_basis_functions, number_of_filters)),
        "bf1": w(keys[2], (1, number_of_filters)),
        "wf2": w(keys[3], (number_of_filters, number_of_filters)),
        "bf2": w(keys[4], (1, number_of_filters)),
        "wo1": w(keys[5], (number_of_filters, number_of_atom_features)),
        "bo1": w(keys[6], (1, number_of_atom_features)),
        "wo2": w(keys[7], (number_of_atom_features, number_of_atom_features)),
        "bo2": w(keys[8], (1, number_of_atom_features)),
    }

    x = jax.random.normal(keys[9], (n_atoms, number_of_atom_features), dtype=jnp.float32)
    pairlist = jax.random.randint(keys[10], (2, n_pairs), 0, n_atoms, dtype=jnp.int32)
    f_ij = jax.random.uniform(
        keys[11], (n_pairs, 1, number_of_radial_basis_functions), dtype=jnp.float32)
    f_ij_cutoff = jax.random.uniform(keys[12], (n_pairs, 1), dtype=jnp.float32)

    out = schnet_interaction(x, pairlist, f_ij, f_ij_cutoff, params)
    out = jax.block_until_ready(out)

    ref = _reference(x, pairlist, f_ij, f_ij_cutoff, params)
    assert out.shape == (n_atoms, number_of_atom_features)
    assert jnp.allclose(out, ref, atol=1e-4, rtol=1e-4), "mismatch vs JAX reference"

    print("KERNEL_OK")
</pallas_src>

<mosaic_0001>
module attributes {stable_mosaic.version = 11 : i64} {
  func.func @_pair_scatter_kernel(%arg0: i32, %arg1: i32, %arg2: memref<8x128xf32, #tpu.memory_space<vmem>>, %arg3: memref<1x256xi32, #tpu.memory_space<vmem>>, %arg4: memref<256x1xi32, #tpu.memory_space<vmem>>, %arg5: memref<256x8xf32, #tpu.memory_space<vmem>>, %arg6: memref<256x1xf32, #tpu.memory_space<vmem>>, %arg7: memref<8x128xf32, #tpu.memory_space<vmem>>, %arg8: memref<1x128xf32, #tpu.memory_space<vmem>>, %arg9: memref<128x128xf32, #tpu.memory_space<vmem>>, %arg10: memref<1x128xf32, #tpu.memory_space<vmem>>, %arg11: memref<8x128xf32, #tpu.memory_space<vmem>>) attributes {dimension_semantics = [#tpu.dimension_semantics<parallel>, #tpu.dimension_semantics<arbitrary>], iteration_bounds = array<i64: 1, 1>, scalar_prefetch = 0 : i64, scratch_operands = 0 : i64, tpu.core_type = #tpu.core_type<tc>, window_params = [{pipeline_mode = #tpu.pipeline_mode<synchronous>, transform_indices = @transform_0, window_bounds = array<i64: 8, 128>}, {transform_indices = @transform_1, window_bounds = array<i64: 1, 256>}, {transform_indices = @transform_2, window_bounds = array<i64: 256, 1>}, {transform_indices = @transform_3, window_bounds = array<i64: 256, 8>}, {transform_indices = @transform_4, window_bounds = array<i64: 256, 1>}, {pipeline_mode = #tpu.pipeline_mode<synchronous>, transform_indices = @transform_5, window_bounds = array<i64: 8, 128>}, {pipeline_mode = #tpu.pipeline_mode<synchronous>, transform_indices = @transform_6, window_bounds = array<i64: 1, 128>}, {pipeline_mode = #tpu.pipeline_mode<synchronous>, transform_indices = @transform_7, window_bounds = array<i64: 128, 128>}, {pipeline_mode = #tpu.pipeline_mode<synchronous>, transform_indices = @transform_8, window_bounds = array<i64: 1, 128>}, {transform_indices = @transform_9, window_bounds = array<i64: 8, 128>}]} {
    %c0_i32 = arith.constant 0 : i32
    %0 = arith.cmpi eq, %arg1, %c0_i32 : i32
    %1 = arith.extui %0 : i1 to i32
    %c0_i32_0 = arith.constant 0 : i32
    %2 = arith.cmpi ne, %1, %c0_i32_0 : i32
    scf.if %2 {
      %cst_30 = arith.constant 0.000000e+00 : f32
      %56 = vector.broadcast %cst_30 : f32 to vector<8x128xf32>
      %c0_31 = arith.constant 0 : index
      %c0_32 = arith.constant 0 : index
      %57 = vector.load %arg11[%c0_31, %c0_32] : memref<8x128xf32, #tpu.memory_space<vmem>>, vector<8x128xf32>
      tpu.vector_store %arg11[%c0_31, %c0_32], %56 {strides = array<i32>} : memref<8x128xf32, #tpu.memory_space<vmem>>, vector<8x128xf32>,
    } else {
    }
    %c0 = arith.constant 0 : index
    %c0_1 = arith.constant 0 : index
    %3 = vector.load %arg5[%c0, %c0_1] : memref<256x8xf32, #tpu.memory_space<vmem>>, vector<256x8xf32>
    %c0_2 = arith.constant 0 : index
    %c0_3 = arith.constant 0 : index
    %4 = vector.load %arg7[%c0_2, %c0_3] : memref<8x128xf32, #tpu.memory_space<vmem>>, vector<8x128xf32>
    %cst = arith.constant dense<0.000000e+00> : vector<256x128xf32>
    %5 = tpu.matmul %3, %4, %cst {dimension_numbers = #tpu.dot_dimension_numbers<[1], [0], [0], [1], [0, 0, 1, 1], [], []>} : vector<256x8xf32>, vector<8x128xf32>, vector<256x128xf32> -> vector<256x128xf32>
    %c0_4 = arith.constant 0 : index
    %c0_5 = arith.constant 0 : index
    %6 = vector.load %arg8[%c0_4, %c0_5] : memref<1x128xf32, #tpu.memory_space<vmem>>, vector<1x128xf32>
    %7 = vector.broadcast %6 : vector<1x128xf32> to vector<256x128xf32>
    %8 = arith.addf %5, %7 : vector<256x128xf32>
    %cst_6 = arith.constant 0.000000e+00 : f32
    %9 = vector.broadcast %cst_6 : f32 to vector<256x128xf32>
    %10 = arith.maximumf %8, %9 : vector<256x128xf32>
    %11 = vector.broadcast %cst_6 : f32 to vector<256x128xf32>
    %12 = arith.subf %8, %11 : vector<256x128xf32>
    %13 = arith.cmpf one, %12, %12 : vector<256x128xf32>
    %14 = vector.broadcast %cst_6 : f32 to vector<256x128xf32>
    %15 = arith.addf %8, %14 : vector<256x128xf32>
    %16 = math.absf %12 : vector<256x128xf32>
    %cst_7 = arith.constant 0.000000e+00 : f32
    %17 = vector.broadcast %cst_7 : f32 to vector<256x128xf32>
    %18 = arith.subf %17, %16 : vector<256x128xf32>
    %19 = math.exp %18 : vector<256x128xf32>
    %20 = math.log1p %19 : vector<256x128xf32>
    %21 = arith.addf %10, %20 : vector<256x128xf32>
    %22 = arith.select %13, %15, %21 : vector<256x128xi1>, vector<256x128xf32>
    %cst_8 = arith.constant 0.693147182 : f32
    %23 = vector.broadcast %cst_8 : f32 to vector<256x128xf32>
    %24 = arith.subf %22, %23 : vector<256x128xf32>
    %c0_9 = arith.constant 0 : index
    %c0_10 = arith.constant 0 : index
    %25 = vector.load %arg9[%c0_9, %c0_10] : memref<128x128xf32, #tpu.memory_space<vmem>>, vector<128x128xf32>
    %cst_11 = arith.constant dense<0.000000e+00> : vector<256x128xf32>
    %26 = tpu.matmul %24, %25, %cst_11 {dimension_numbers = #tpu.dot_dimension_numbers<[1], [0], [0], [1], [0, 0, 1, 1], [], []>} : vector<256x128xf32>, vector<128x128xf32>, vector<256x128xf32> -> vector<256x128xf32>
    %c0_12 = arith.constant 0 : index
    %c0_13 = arith.constant 0 : index
    %27 = vector.load %arg10[%c0_12, %c0_13] : memref<1x128xf32, #tpu.memory_space<vmem>>, vector<1x128xf32>
    %28 = vector.broadcast %27 : vector<1x128xf32> to vector<256x128xf32>
    %29 = arith.addf %26, %28 : vector<256x128xf32>
    %c0_14 = arith.constant 0 : index
    %c0_15 = arith.constant 0 : index
    %30 = vector.load %arg6[%c0_14, %c0_15] : memref<256x1xf32, #tpu.memory_space<vmem>>, vector<256x1xf32>
    %31 = vector.broadcast %30 : vector<256x1xf32> to vector<256x128xf32>
    %32 = arith.mulf %29, %31 : vector<256x128xf32>
    %c0_16 = arith.constant 0 : index
    %c0_17 = arith.constant 0 : index
    %33 = vector.load %arg4[%c0_16, %c0_17] : memref<256x1xi32, #tpu.memory_space<vmem>>, vector<256x1xi32>
    %c0_18 = arith.constant 0 : index
    %c0_19 = arith.constant 0 : index
    %34 = vector.load %arg3[%c0_18, %c0_19] : memref<1x256xi32, #tpu.memory_space<vmem>>, vector<1x256xi32>
    %35 = tpu.iota {dimensions = array<i32: 1>} : vector<256x8xi32>
    %c0_i32_20 = arith.constant 0 : i32
    %36 = vector.broadcast %c0_i32_20 : i32 to vector<256x8xi32>
    %37 = arith.addi %35, %36 : vector<256x8xi32>
    %38 = vector.broadcast %33 : vector<256x1xi32> to vector<256x8xi32>
    %39 = arith.cmpi eq, %37, %38 : vector<256x8xi32>
    %40 = arith.extui %39 : vector<256x8xi1> to vector<256x8xi32>
    %41 = arith.sitofp %40 : vector<256x8xi32> to vector<256x8xf32>
    %c0_21 = arith.constant 0 : index
    %c0_22 = arith.constant 0 : index
    %42 = vector.load %arg2[%c0_21, %c0_22] : memref<8x128xf32, #tpu.memory_space<vmem>>, vector<8x128xf32>
    %cst_23 = arith.constant dense<0.000000e+00> : vector<256x128xf32>
    %43 = tpu.matmul %41, %42, %cst_23 {dimension_numbers = #tpu.dot_dimension_numbers<[1], [0], [0], [1], [0, 0, 1, 1], [], []>} : vector<256x8xf32>, vector<8x128xf32>, vector<256x128xf32> -> vector<256x128xf32>
    %44 = arith.mulf %43, %32 : vector<256x128xf32>
    %45 = tpu.iota {dimensions = array<i32: 0>} : vector<8x256xi32>
    %c0_i32_24 = arith.constant 0 : i32
    %46 = vector.broadcast %c0_i32_24 : i32 to vector<8x256xi32>
    %47 = arith.addi %45, %46 : vector<8x256xi32>
    %48 = vector.broadcast %34 : vector<1x256xi32> to vector<8x256xi32>
    %49 = arith.cmpi eq, %47, %48 : vector<8x256xi32>
    %50 = arith.extui %49 : vector<8x256xi1> to vector<8x256xi32>
    %51 = arith.sitofp %50 : vector<8x256xi32> to vector<8x256xf32>
    %c0_25 = arith.constant 0 : index
    %c0_26 = arith.constant 0 : index
    %52 = vector.load %arg11[%c0_25, %c0_26] : memref<8x128xf32, #tpu.memory_space<vmem>>, vector<8x128xf32>
    %cst_27 = arith.constant dense<0.000000e+00> : vector<8x128xf32>
    %53 = tpu.matmul %51, %44, %cst_27 {dimension_numbers = #tpu.dot_dimension_numbers<[1], [0], [0], [1], [0, 0, 1, 1], [], []>} : vector<8x256xf32>, vector<256x128xf32>, vector<8x128xf32> -> vector<8x128xf32>
    %54 = arith.addf %52, %53 : vector<8x128xf32>
    %c0_28 = arith.constant 0 : index
    %c0_29 = arith.constant 0 : index
    %55 = vector.load %arg11[%c0_28, %c0_29] : memref<8x128xf32, #tpu.memory_space<vmem>>, vector<8x128xf32>
    tpu.vector_store %arg11[%c0_28, %c0_29], %54 {strides = array<i32>} : memref<8x128xf32, #tpu.memory_space<vmem>>, vector<8x128xf32>,
    return
  }
  func.func @transform_0(%arg0: i32, %arg1: i32) -> (i32, i32) {
    %c0_i32 = arith.constant 0 : i32
    %c0_i32_0 = arith.constant 0 : i32
    %c0_i32_1 = arith.constant 0 : i32
    return %c0_i32, %c0_i32_0 : i32, i32
  }
  func.func @transform_1(%arg0: i32, %arg1: i32) -> (i32, i32) {
    %c1_i32 = arith.constant 1 : i32
    %0 = arith.muli %arg0, %c1_i32 : i32
    %1 = arith.addi %0, %arg1 : i32
    %c0_i32 = arith.constant 0 : i32
    %c0_i32_0 = arith.constant 0 : i32
    return %c0_i32, %1 : i32, i32
  }
  func.func @transform_2(%arg0: i32, %arg1: i32) -> (i32, i32) {
    %c1_i32 = arith.constant 1 : i32
    %0 = arith.muli %arg0, %c1_i32 : i32
    %1 = arith.addi %0, %arg1 : i32
    %c0_i32 = arith.constant 0 : i32
    %c0_i32_0 = arith.constant 0 : i32
    return %1, %c0_i32 : i32, i32
  }
  func.func @transform_3(%arg0: i32, %arg1: i32) -> (i32, i32) {
    %c1_i32 = arith.constant 1 : i32
    %0 = arith.muli %arg0, %c1_i32 : i32
    %1 = arith.addi %0, %arg1 : i32
    %c0_i32 = arith.constant 0 : i32
    %c0_i32_0 = arith.constant 0 : i32
    return %1, %c0_i32 : i32, i32
  }
  func.func @transform_4(%arg0: i32, %arg1: i32) -> (i32, i32) {
    %c1_i32 = arith.constant 1 : i32
    %0 = arith.muli %arg0, %c1_i32 : i32
    %1 = arith.addi %0, %arg1 : i32
    %c0_i32 = arith.constant 0 : i32
    %c0_i32_0 = arith.constant 0 : i32
    return %1, %c0_i32 : i32, i32
  }
  func.func @transform_5(%arg0: i32, %arg1: i32) -> (i32, i32) {
    %c0_i32 = arith.constant 0 : i32
    %c0_i32_0 = arith.constant 0 : i32
    %c0_i32_1 = arith.constant 0 : i32
    return %c0_i32, %c0_i32_0 : i32, i32
  }
  func.func @transform_6(%arg0: i32, %arg1: i32) -> (i32, i32) {
    %c0_i32 = arith.constant 0 : i32
    %c0_i32_0 = arith.constant 0 : i32
    %c0_i32_1 = arith.constant 0 : i32
    return %c0_i32, %c0_i32_0 : i32, i32
  }
  func.func @transform_7(%arg0: i32, %arg1: i32) -> (i32, i32) {
    %c0_i32 = arith.constant 0 : i32
    %c0_i32_0 = arith.constant 0 : i32
    %c0_i32_1 = arith.constant 0 : i32
    return %c0_i32, %c0_i32_0 : i32, i32
  }
  func.func @transform_8(%arg0: i32, %arg1: i32) -> (i32, i32) {
    %c0_i32 = arith.constant 0 : i32
    %c0_i32_0 = arith.constant 0 : i32
    %c0_i32_1 = arith.constant 0 : i32
    return %c0_i32, %c0_i32_0 : i32, i32
  }
  func.func @transform_9(%arg0: i32, %arg1: i32) -> (i32, i32) {
    %c0_i32 = arith.constant 0 : i32
    %c0_i32_0 = arith.constant 0 : i32
    return %arg0, %c0_i32 : i32, i32
  }
}

</mosaic_0001>

<llo_original>
// kernel: tpu_custom_call.1
$region0: #{tpu_custom_call.1}
  #allocation0 [shape = 'u32[]', space=smem, size = 0x4, offset = 0x4, fixed_abs, tag = 'smem constant byte address 0x4 - core index']
  #allocation1 [shape = 'u32[144,128]{1,0:T(1,128)}', space=vmem, size = 0x12000, scoped, tag = 'internal scratch']
  %s0 = inlined_call_operand.vmem [shape: f32[8,128], index: 0, kind: input, shape index: {}]
  %s1 = inlined_call_operand.vmem [shape: s32[1,256], index: 1, kind: input, shape index: {}]
  %s2 = inlined_call_operand.vmem [shape: s32[256,1], index: 2, kind: input, shape index: {}]
  %s3 = inlined_call_operand.vmem [shape: f32[256,8], index: 3, kind: input, shape index: {}]
  %s4 = inlined_call_operand.vmem [shape: f32[256,1], index: 4, kind: input, shape index: {}]
  %s5 = inlined_call_operand.vmem [shape: f32[8,128], index: 5, kind: input, shape index: {}]
  %s6 = inlined_call_operand.vmem [shape: f32[1,128], index: 6, kind: input, shape index: {}]
  %s7 = inlined_call_operand.vmem [shape: f32[128,128], index: 7, kind: input, shape index: {}]
  %s8 = inlined_call_operand.vmem [shape: f32[1,128], index: 8, kind: input, shape index: {}]
  %s9 = inlined_call_operand.hbm [shape: f32[8,128], index: 9, kind: output, shape index: {}]
  %s10 = sld [smem:[#allocation0]]
  $region50: #{tpu_custom_call.1} parent=0
    _
  %s12 = ssub.s32 1, %s10
  %s13 = scalar_select 0, %s12, %s10
  $region1: #{tpu_custom_call.1} parent=0
    #allocation2 [shape = 'u8[4096]{0}', space=vmem, size = 0x1000, scoped, tag = 'output window, operand 0, single buffered']
    #allocation3 [shape = 's32[1]{0}', space=sflag, size = 0x4, scoped, tag = 'scoped memory for tpu_custom_call.1']
    %14 = vsyncpa [#allocation3], 0
    // Predicated region
    $region2: #{tpu_custom_call.1} parent=1 // pred_check
      _
    $region3: #{tpu_custom_call.1} parent=1 // pred_check_branch
      %16 = sbr.rel (0) target = $region5
    $region4: #{tpu_custom_call.1} parent=1 // pred_region
      _
    $region5: #{tpu_custom_call.1} parent=1 // pred_fallthru
      _
    // Predicated region
    $region6: #{tpu_custom_call.1} parent=1 // pred_check
      _
    $region7: #{tpu_custom_call.1} parent=1 // pred_check_branch
      %18 = sbr.rel (0) target = $region9
    $region8: #{tpu_custom_call.1} parent=1 // pred_region
      %s19 = sadd.s32 0, 0
      %s20 = smul.u32 2, %s19
      %p21 = scmp.lt.s32.totalorder %s20, 1
      %s22 = scalar_select %p21, %s20, 1
      %s23 = scalar_lea.vmem %s1, %s22
      %s24 = sadd.s32 0, 0
      %s25 = smul.u32 2, %s24
    $region9: #{tpu_custom_call.1} parent=1 // pred_fallthru
      _
    // Predicated region
    $region10: #{tpu_custom_call.1} parent=1 // pred_check
      _
    $region11: #{tpu_custom_call.1} parent=1 // pred_check_branch
      %27 = sbr.rel (0) target = $region13
    $region12: #{tpu_custom_call.1} parent=1 // pred_region
      %s28 = sadd.s32 0, 0
      %s29 = smul.u32 32, %s28
      %p30 = scmp.lt.s32.totalorder %s29, 31
      %s31 = scalar_select %p30, %s29, 31
      %s32 = smul.addr %s31, 8
      %s33 = scalar_lea.vmem %s2, %s32
      %s34 = sadd.s32 0, 0
      %s35 = smul.u32 32, %s34
    $region13: #{tpu_custom_call.1} parent=1 // pred_fallthru
      _
    // Predicated region
    $region14: #{tpu_custom_call.1} parent=1 // pred_check
      _
    $region15: #{tpu_custom_call.1} parent=1 // pred_check_branch
      %37 = sbr.rel (0) target = $region17
    $region16: #{tpu_custom_call.1} parent=1 // pred_region
      %s38 = sadd.s32 0, 0
      %s39 = smul.u32 32, %s38
      %p40 = scmp.lt.s32.totalorder %s39, 31
      %s41 = scalar_select %p40, %s39, 31
      %s42 = smul.addr %s41, 8
      %s43 = scalar_lea.vmem %s3, %s42
      %s44 = sadd.s32 0, 0
      %s45 = smul.u32 32, %s44
    $region17: #{tpu_custom_call.1} parent=1 // pred_fallthru
      _
    // Predicated region
    $region18: #{tpu_custom_call.1} parent=1 // pred_check
      _
    $region19: #{tpu_custom_call.1} parent=1 // pred_check_branch
      %47 = sbr.rel (0) target = $region21
    $region20: #{tpu_custom_call.1} parent=1 // pred_region
      %s48 = sadd.s32 0, 0
      %s49 = smul.u32 32, %s48
      %p50 = scmp.lt.s32.totalorder %s49, 31
      %s51 = scalar_select %p50, %s49, 31
      %s52 = smul.addr %s51, 8
      %s53 = scalar_lea.vmem %s4, %s52
      %s54 = sadd.s32 0, 0
      %s55 = smul.u32 32, %s54
    $region21: #{tpu_custom_call.1} parent=1 // pred_fallthru
      _
    // Predicated region
    $region22: #{tpu_custom_call.1} parent=1 // pred_check
      _
    $region23: #{tpu_custom_call.1} parent=1 // pred_check_branch
      %57 = sbr.rel (0) target = $region25
    $region24: #{tpu_custom_call.1} parent=1 // pred_region
      _
    $region25: #{tpu_custom_call.1} parent=1 // pred_fallthru
      _
    // Predicated region
    $region26: #{tpu_custom_call.1} parent=1 // pred_check
      _
    $region27: #{tpu_custom_call.1} parent=1 // pred_check_branch
      %59 = sbr.rel (0) target = $region29
    $region28: #{tpu_custom_call.1} parent=1 // pred_region
      _
    $region29: #{tpu_custom_call.1} parent=1 // pred_fallthru
      _
    // Predicated region
    $region30: #{tpu_custom_call.1} parent=1 // pred_check
      _
    $region31: #{tpu_custom_call.1} parent=1 // pred_check_branch
      %61 = sbr.rel (0) target = $region33
    $region32: #{tpu_custom_call.1} parent=1 // pred_region
      _
    $region33: #{tpu_custom_call.1} parent=1 // pred_fallthru
      _
    // Predicated region
    $region34: #{tpu_custom_call.1} parent=1 // pred_check
      _
    $region35: #{tpu_custom_call.1} parent=1 // pred_check_branch
      %63 = sbr.rel (0) target = $region37
    $region36: #{tpu_custom_call.1} parent=1 // pred_region
      _
    $region37: #{tpu_custom_call.1} parent=1 // pred_fallthru
      _
    %s64 = sadd.s32 0, 0
    %s65 = smul.u32 2, %s64
    %p66 = scmp.lt.s32.totalorder %s65, 1
    %s67 = scalar_select %p66, %s65, 1
    %s68 = scalar_lea.vmem %s1, %s67
    %s69 = sadd.s32 0, 0
    %s70 = smul.u32 32, %s69
    %p71 = scmp.lt.s32.totalorder %s70, 31
    %s72 = scalar_select %p71, %s70, 31
    %s73 = smul.addr %s72, 8
    %s74 = scalar_lea.vmem %s2, %s73
    %s75 = sadd.s32 0, 0
    %s76 = smul.u32 32, %s75
    %p77 = scmp.lt.s32.totalorder %s76, 31
    %s78 = scalar_select %p77, %s76, 31
    %s79 = smul.addr %s78, 8
    %s80 = scalar_lea.vmem %s3, %s79
    %s81 = sadd.s32 0, 0
    %s82 = smul.u32 32, %s81
    %p83 = scmp.lt.s32.totalorder %s82, 31
    %s84 = scalar_select %p83, %s82, 31
    %s85 = smul.addr %s84, 8
    %s86 = scalar_lea.vmem %s4, %s85
    %s87 = sadd.s32 0, 0
    %s88 = smul.u32 2, %s87
    %p89 = scmp.lt.s32.totalorder %s88, 1
    %s90 = scalar_select %p89, %s88, 1
    %s91 = scalar_lea.vmem %s1, %s90
    %s92 = sadd.s32 0, 0
    %s93 = smul.u32 2, %s92
    %s94 = sadd.s32 0, 0
    %s95 = smul.u32 32, %s94
    %p96 = scmp.lt.s32.totalorder %s95, 31
    %s97 = scalar_select %p96, %s95, 31
    %s98 = smul.addr %s97, 8
    %s99 = scalar_lea.vmem %s2, %s98
    %s100 = sadd.s32 0, 0
    %s101 = smul.u32 32, %s100
    %s102 = sadd.s32 0, 0
    %s103 = smul.u32 32, %s102
    %p104 = scmp.lt.s32.totalorder %s103, 31
    %s105 = scalar_select %p104, %s103, 31
    %s106 = smul.addr %s105, 8
    %s107 = scalar_lea.vmem %s3, %s106
    %s108 = sadd.s32 0, 0
    %s109 = smul.u32 32, %s108
    %s110 = sadd.s32 0, 0
    %s111 = smul.u32 32, %s110
    %p112 = scmp.lt.s32.totalorder %s111, 31
    %s113 = scalar_select %p112, %s111, 31
    %s114 = smul.addr %s113, 8
    %s115 = scalar_lea.vmem %s4, %s114
    %s116 = sadd.s32 0, 0
    %s117 = smul.u32 32, %s116
    %p118 = scmp.eq.s32.totalorder 0, 0
    // Predicated region
    $region38: #{tpu_custom_call.1} parent=1 // pred_check
      %p119 = pneg %p118
    $region39: #{tpu_custom_call.1} parent=1 // pred_check_branch
      %121 = sbr.rel (%p119) target = $region41
    $region40: #{tpu_custom_call.1} parent=1 // pred_region
      %122 = vst [vmem:[#allocation2] sm:$0xff] 0.0
    $region41: #{tpu_custom_call.1} parent=1 // pred_fallthru
      _
    %v123 = vld [vmem:[%s107] sm:$0xff]
    %v124 = vld [vmem:[%s107 + $0x8] sm:$0xff]
    %v125 = vld [vmem:[%s107 + $0x10] sm:$0xff]
    %v126 = vld [vmem:[%s107 + $0x18] sm:$0xff]
    %v127 = vld [vmem:[%s107 + $0x20] sm:$0xff]
    %v128 = vld [vmem:[%s107 + $0x28] sm:$0xff]
    %v129 = vld [vmem:[%s107 + $0x30] sm:$0xff]
    %v130 = vld [vmem:[%s107 + $0x38] sm:$0xff]
    %v131 = vld [vmem:[%s107 + $0x40] sm:$0xff]
    %v132 = vld [vmem:[%s107 + $0x48] sm:$0xff]
    %v133 = vld [vmem:[%s107 + $0x50] sm:$0xff]
    %v134 = vld [vmem:[%s107 + $0x58] sm:$0xff]
    %v135 = vld [vmem:[%s107 + $0x60] sm:$0xff]
    %v136 = vld [vmem:[%s107 + $0x68] sm:$0xff]
    %v137 = vld [vmem:[%s107 + $0x70] sm:$0xff]
    %v138 = vld [vmem:[%s107 + $0x78] sm:$0xff]
    %v139 = vld [vmem:[%s107 + $0x80] sm:$0xff]
    %v140 = vld [vmem:[%s107 + $0x88] sm:$0xff]
    %v141 = vld [vmem:[%s107 + $0x90] sm:$0xff]
    %v142 = vld [vmem:[%s107 + $0x98] sm:$0xff]
    %v143 = vld [vmem:[%s107 + $0xa0] sm:$0xff]
    %v144 = vld [vmem:[%s107 + $0xa8] sm:$0xff]
    %v145 = vld [vmem:[%s107 + $0xb0] sm:$0xff]
    %v146 = vld [vmem:[%s107 + $0xb8] sm:$0xff]
    %v147 = vld [vmem:[%s107 + $0xc0] sm:$0xff]
    %v148 = vld [vmem:[%s107 + $0xc8] sm:$0xff]
    %v149 = vld [vmem:[%s107 + $0xd0] sm:$0xff]
    %v150 = vld [vmem:[%s107 + $0xd8] sm:$0xff]
    %v151 = vld [vmem:[%s107 + $0xe0] sm:$0xff]
    %v152 = vld [vmem:[%s107 + $0xe8] sm:$0xff]
    %v153 = vld [vmem:[%s107 + $0xf0] sm:$0xff]
    %v154 = vld [vmem:[%s107 + $0xf8] sm:$0xff]
    %v155 = vld [vmem:[%s5] sm:$0xff]
    %v156 = vld [vmem:[%s6] sm:$0x1]
    %v158 = vlaneseq
    %v159 = vshrl.u32 %v158, 7
    %v160 = vsub.s32 0, %v159
    %v161 = vrot.slane %v156, %v160
    %vm163 = vcmask 64512
    %v165 = vsel %vm163, %v123, 0
    %v168 = vsel %vm163, %v124, 0
    %v171 = vsel %vm163, %v125, 0
    %v174 = vsel %vm163, %v126, 0
    %v177 = vsel %vm163, %v127, 0
    %v180 = vsel %vm163, %v128, 0
    %v183 = vsel %vm163, %v129, 0
    %v186 = vsel %vm163, %v130, 0
    %v189 = vsel %vm163, %v131, 0
    %v192 = vsel %vm163, %v132, 0
    %v195 = vsel %vm163, %v133, 0
    %v198 = vsel %vm163, %v134, 0
    %v201 = vsel %vm163, %v135, 0
    %v204 = vsel %vm163, %v136, 0
    %v207 = vsel %vm163, %v137, 0
    %v210 = vsel %vm163, %v138, 0
    %v213 = vsel %vm163, %v139, 0
    %v216 = vsel %vm163, %v140, 0
    %v219 = vsel %vm163, %v141, 0
    %v222 = vsel %vm163, %v142, 0
    %v225 = vsel %vm163, %v143, 0
    %v228 = vsel %vm163, %v144, 0
    %v231 = vsel %vm163, %v145, 0
    %v234 = vsel %vm163, %v146, 0
    %v237 = vsel %vm163, %v147, 0
    %v240 = vsel %vm163, %v148, 0
    %v243 = vsel %vm163, %v149, 0
    %v246 = vsel %vm163, %v150, 0
    %v249 = vsel %vm163, %v151, 0
    %v252 = vsel %vm163, %v152, 0
    %v255 = vsel %vm163, %v153, 0
    %v258 = vsel %vm163, %v154, 0
    %260 = vmatprep.subr.mxu0 0.0
    %261 = vmatpush1.msra.mxu0 0.0
    %262 = vmatprep.subr.mxu0 0.0
    %263 = vmatpush1.msra.mxu0 0.0
    %264 = vmatprep.subr.mxu0 0.0
    %265 = vmatpush1.msra.mxu0 0.0
    %266 = vmatprep.subr.mxu0 0.0
    %267 = vmatpush1.msra.mxu0 0.0
    %268 = vmatprep.subr.mxu0 0.0
    %269 = vmatpush1.msra.mxu0 0.0
    %270 = vmatprep.subr.mxu0 0.0
    %271 = vmatpush1.msra.mxu0 0.0
    %272 = vmatprep.subr.mxu0 0.0
    %273 = vmatpush1.msra.mxu0 0.0
    %274 = vmatprep.subr.mxu0 0.0
    %275 = vmatpush1.msra.mxu0 0.0
    %276 = vmatprep.subr.mxu0 0.0
    %277 = vmatpush1.msra.mxu0 0.0
    %278 = vmatprep.subr.mxu0 0.0
    %279 = vmatpush1.msra.mxu0 0.0
    %280 = vmatprep.subr.mxu0 0.0
    %281 = vmatpush1.msra.mxu0 0.0
    %282 = vmatprep.subr.mxu0 0.0
    %283 = vmatpush1.msra.mxu0 0.0
    %284 = vmatprep.subr.mxu0 0.0
    %285 = vmatpush1.msra.mxu0 0.0
    %286 = vmatprep.subr.mxu0 0.0
    %287 = vmatpush1.msra.mxu0 0.0
    %288 = vmatprep.subr.mxu0 0.0
    %289 = vmatpush1.msra.mxu0 0.0
    %290 = vmatprep.subr.mxu0 0.0
    %291 = vmatpush1.msra.mxu0 %v155
    %292 = vmatprep.subr.mxu0 0.0
    %293 = vmatpush2.msra.mxu0 0.0
    %294 = vmatprep.subr.mxu0 0.0
    %295 = vmatpush2.msra.mxu0 0.0
    %296 = vmatprep.subr.mxu0 0.0
    %297 = vmatpush2.msra.mxu0 0.0
    %298 = vmatprep.subr.mxu0 0.0
    %299 = vmatpush2.msra.mxu0 0.0
    %300 = vmatprep.subr.mxu0 0.0
    %301 = vmatpush2.msra.mxu0 0.0
    %302 = vmatprep.subr.mxu0 0.0
    %303 = vmatpush2.msra.mxu0 0.0
    %304 = vmatprep.subr.mxu0 0.0
    %305 = vmatpush2.msra.mxu0 0.0
    %306 = vmatprep.subr.mxu0 0.0
    %307 = vmatpush2.msra.mxu0 0.0
    %308 = vmatprep.subr.mxu0 0.0
    %309 = vmatpush2.msra.mxu0 0.0
    %310 = vmatprep.subr.mxu0 0.0
    %311 = vmatpush2.msra.mxu0 0.0
    %312 = vmatprep.subr.mxu0 0.0
    %313 = vmatpush2.msra.mxu0 0.0
    %314 = vmatprep.subr.mxu0 0.0
    %315 = vmatpush2.msra.mxu0 0.0
    %316 = vmatprep.subr.mxu0 0.0
    %317 = vmatpush2.msra.mxu0 0.0
    %318 = vmatprep.subr.mxu0 0.0
    %319 = vmatpush2.msra.mxu0 0.0
    %320 = vmatprep.subr.mxu0 0.0
    %321 = vmatpush2.msra.mxu0 0.0
    %322 = vmatprep.subr.mxu0 0.0
    %323 = vmatpush2.msra.mxu0 0.0
    %324 = vmatprep.mubr.f32.mxu0 0.0
    %325 = vmatmul.mubr.f32.gmra.mxu0 %v165
    %v326 = vpop.f32.mrf.mxu0
    %v327 = vadd.f32 %v161, %v326
    %v328 = vpop.f32.mrf.mxu0
    %329 = vmatprep.mubr.f32.mxu0 0.0
    %330 = vmatmul.mubr.f32.gmra.mxu0 %v168
    %v331 = vpop.f32.mrf.mxu0
    %v332 = vadd.f32 %v161, %v331
    %v333 = vpop.f32.mrf.mxu0
    %334 = vmatprep.mubr.f32.mxu0 0.0
    %335 = vmatmul.mubr.f32.gmra.mxu0 %v171
    %v336 = vpop.f32.mrf.mxu0
    %v337 = vadd.f32 %v161, %v336
    %v338 = vpop.f32.mrf.mxu0
    %339 = vmatprep.mubr.f32.mxu0 0.0
    %340 = vmatmul.mubr.f32.gmra.mxu0 %v174
    %v341 = vpop.f32.mrf.mxu0
    %v342 = vadd.f32 %v161, %v341
    %v343 = vpop.f32.mrf.mxu0
    %344 = vmatprep.mubr.f32.mxu0 0.0
    %345 = vmatmul.mubr.f32.gmra.mxu0 %v177
    %v346 = vpop.f32.mrf.mxu0
    %v347 = vadd.f32 %v161, %v346
    %v348 = vpop.f32.mrf.mxu0
    %349 = vmatprep.mubr.f32.mxu0 0.0
    %350 = vmatmul.mubr.f32.gmra.mxu0 %v180
    %v351 = vpop.f32.mrf.mxu0
    %v352 = vadd.f32 %v161, %v351
    %v353 = vpop.f32.mrf.mxu0
    %354 = vmatprep.mubr.f32.mxu0 0.0
    %355 = vmatmul.mubr.f32.gmra.mxu0 %v183
    %v356 = vpop.f32.mrf.mxu0
    %v357 = vadd.f32 %v161, %v356
    %v358 = vpop.f32.mrf.mxu0
    %359 = vmatprep.mubr.f32.mxu0 0.0
    %360 = vmatmul.mubr.f32.gmra.mxu0 %v186
    %v361 = vpop.f32.mrf.mxu0
    %v362 = vadd.f32 %v161, %v361
    %v363 = vpop.f32.mrf.mxu0
    %364 = vmatprep.mubr.f32.mxu0 0.0
    %365 = vmatmul.mubr.f32.gmra.mxu0 %v189
    %v366 = vpop.f32.mrf.mxu0
    %v367 = vadd.f32 %v161, %v366
    %v368 = vpop.f32.mrf.mxu0
    %369 = vmatprep.mubr.f32.mxu0 0.0
    %370 = vmatmul.mubr.f32.gmra.mxu0 %v192
    %v371 = vpop.f32.mrf.mxu0
    %v372 = vadd.f32 %v161, %v371
    %v373 = vpop.f32.mrf.mxu0
    %374 = vmatprep.mubr.f32.mxu0 0.0
    %375 = vmatmul.mubr.f32.gmra.mxu0 %v195
    %v376 = vpop.f32.mrf.mxu0
    %v377 = vadd.f32 %v161, %v376
    %v378 = vpop.f32.mrf.mxu0
    %379 = vmatprep.mubr.f32.mxu0 0.0
    %380 = vmatmul.mubr.f32.gmra.mxu0 %v198
    %v381 = vpop.f32.mrf.mxu0
    %v382 = vadd.f32 %v161, %v381
    %v383 = vpop.f32.mrf.mxu0
    %384 = vmatprep.mubr.f32.mxu0 0.0
    %385 = vmatmul.mubr.f32.gmra.mxu0 %v201
    %v386 = vpop.f32.mrf.mxu0
    %v387 = vadd.f32 %v161, %v386
    %v388 = vpop.f32.mrf.mxu0
    %389 = vmatprep.mubr.f32.mxu0 0.0
    %390 = vmatmul.mubr.f32.gmra.mxu0 %v204
    %v391 = vpop.f32.mrf.mxu0
    %v392 = vadd.f32 %v161, %v391
    %v393 = vpop.f32.mrf.mxu0
    %394 = vmatprep.mubr.f32.mxu0 0.0
    %395 = vmatmul.mubr.f32.gmra.mxu0 %v207
    %v396 = vpop.f32.mrf.mxu0
    %v397 = vadd.f32 %v161, %v396
    %v398 = vpop.f32.mrf.mxu0
    %399 = vmatprep.mubr.f32.mxu0 0.0
    %400 = vmatmul.mubr.f32.gmra.mxu0 %v210
    %v401 = vpop.f32.mrf.mxu0
    %v402 = vadd.f32 %v161, %v401
    %v403 = vpop.f32.mrf.mxu0
    %404 = vmatprep.mubr.f32.mxu0 0.0
    %405 = vmatmul.mubr.f32.gmra.mxu0 %v213
    %v406 = vpop.f32.mrf.mxu0
    %v407 = vadd.f32 %v161, %v406
    %v408 = vpop.f32.mrf.mxu0
    %409 = vmatprep.mubr.f32.mxu0 0.0
    %410 = vmatmul.mubr.f32.gmra.mxu0 %v216
    %v411 = vpop.f32.mrf.mxu0
    %v412 = vadd.f32 %v161, %v411
    %v413 = vpop.f32.mrf.mxu0
    %414 = vmatprep.mubr.f32.mxu0 0.0
    %415 = vmatmul.mubr.f32.gmra.mxu0 %v219
    %v416 = vpop.f32.mrf.mxu0
    %v417 = vadd.f32 %v161, %v416
    %v418 = vpop.f32.mrf.mxu0
    %419 = vmatprep.mubr.f32.mxu0 0.0
    %420 = vmatmul.mubr.f32.gmra.mxu0 %v222
    %v421 = vpop.f32.mrf.mxu0
    %v422 = vadd.f32 %v161, %v421
    %v423 = vpop.f32.mrf.mxu0
    %424 = vmatprep.mubr.f32.mxu0 0.0
    %425 = vmatmul.mubr.f32.gmra.mxu0 %v225
    %v426 = vpop.f32.mrf.mxu0
    %v427 = vadd.f32 %v161, %v426
    %v428 = vpop.f32.mrf.mxu0
    %429 = vmatprep.mubr.f32.mxu0 0.0
    %430 = vmatmul.mubr.f32.gmra.mxu0 %v228
    %v431 = vpop.f32.mrf.mxu0
    %v432 = vadd.f32 %v161, %v431
    %v433 = vpop.f32.mrf.mxu0
    %434 = vmatprep.mubr.f32.mxu0 0.0
    %435 = vmatmul.mubr.f32.gmra.mxu0 %v231
    %v436 = vpop.f32.mrf.mxu0
    %v437 = vadd.f32 %v161, %v436
    %v438 = vpop.f32.mrf.mxu0
    %439 = vmatprep.mubr.f32.mxu0 0.0
    %440 = vmatmul.mubr.f32.gmra.mxu0 %v234
    %v441 = vpop.f32.mrf.mxu0
    %v442 = vadd.f32 %v161, %v441
    %v443 = vpop.f32.mrf.mxu0
    %444 = vmatprep.mubr.f32.mxu0 0.0
    %445 = vmatmul.mubr.f32.gmra.mxu0 %v237
    %v446 = vpop.f32.mrf.mxu0
    %v447 = vadd.f32 %v161, %v446
    %v448 = vpop.f32.mrf.mxu0
    %449 = vmatprep.mubr.f32.mxu0 0.0
    %450 = vmatmul.mubr.f32.gmra.mxu0 %v240
    %v451 = vpop.f32.mrf.mxu0
    %v452 = vadd.f32 %v161, %v451
    %v453 = vpop.f32.mrf.mxu0
    %454 = vmatprep.mubr.f32.mxu0 0.0
    %455 = vmatmul.mubr.f32.gmra.mxu0 %v243
    %v456 = vpop.f32.mrf.mxu0
    %v457 = vadd.f32 %v161, %v456
    %v458 = vpop.f32.mrf.mxu0
    %459 = vmatprep.mubr.f32.mxu0 0.0
    %460 = vmatmul.mubr.f32.gmra.mxu0 %v246
    %v461 = vpop.f32.mrf.mxu0
    %v462 = vadd.f32 %v161, %v461
    %v463 = vpop.f32.mrf.mxu0
    %464 = vmatprep.mubr.f32.mxu0 0.0
    %465 = vmatmul.mubr.f32.gmra.mxu0 %v249
    %v466 = vpop.f32.mrf.mxu0
    %v467 = vadd.f32 %v161, %v466
    %v468 = vpop.f32.mrf.mxu0
    %469 = vmatprep.mubr.f32.mxu0 0.0
    %470 = vmatmul.mubr.f32.gmra.mxu0 %v252
    %v471 = vpop.f32.mrf.mxu0
    %v472 = vadd.f32 %v161, %v471
    %v473 = vpop.f32.mrf.mxu0
    %474 = vmatprep.mubr.f32.mxu0 0.0
    %475 = vmatmul.mubr.f32.gmra.mxu0 %v255
    %v476 = vpop.f32.mrf.mxu0
    %v477 = vadd.f32 %v161, %v476
    %v478 = vpop.f32.mrf.mxu0
    %479 = vmatprep.mubr.f32.mxu0 0.0
    %480 = vmatmul.mubr.f32.gmra.mxu0 %v258
    %v481 = vpop.f32.mrf.mxu0
    %v482 = vadd.f32 %v161, %v481
    %v483 = vpop.f32.mrf.mxu0
    %484 = vdwg.mxu0
    %v485 = vmax.f32 %v327, 0.0
    %v486 = vmax.f32 %v332, 0.0
    %v487 = vmax.f32 %v337, 0.0
    %v488 = vmax.f32 %v342, 0.0
    %v489 = vmax.f32 %v347, 0.0
    %v490 = vmax.f32 %v352, 0.0
    %v491 = vmax.f32 %v357, 0.0
    %v492 = vmax.f32 %v362, 0.0
    %v493 = vmax.f32 %v367, 0.0
    %v494 = vmax.f32 %v372, 0.0
    %v495 = vmax.f32 %v377, 0.0
    %v496 = vmax.f32 %v382, 0.0
    %v497 = vmax.f32 %v387, 0.0
    %v498 = vmax.f32 %v392, 0.0
    %v499 = vmax.f32 %v397, 0.0
    %v500 = vmax.f32 %v402, 0.0
    %v501 = vmax.f32 %v407, 0.0
    %v502 = vmax.f32 %v412, 0.0
    %v503 = vmax.f32 %v417, 0.0
    %v504 = vmax.f32 %v422, 0.0
    %v505 = vmax.f32 %v427, 0.0
    %v506 = vmax.f32 %v432, 0.0
    %v507 = vmax.f32 %v437, 0.0
    %v508 = vmax.f32 %v442, 0.0
    %v509 = vmax.f32 %v447, 0.0
    %v510 = vmax.f32 %v452, 0.0
    %v511 = vmax.f32 %v457, 0.0
    %v512 = vmax.f32 %v462, 0.0
    %v513 = vmax.f32 %v467, 0.0
    %v514 = vmax.f32 %v472, 0.0
    %v515 = vmax.f32 %v477, 0.0
    %v516 = vmax.f32 %v482, 0.0
    %vm517 = vcmp.ne.f32.partialorder %v327, %v327
    %vm518 = vcmp.ne.f32.partialorder %v332, %v332
    %vm519 = vcmp.ne.f32.partialorder %v337, %v337
    %vm520 = vcmp.ne.f32.partialorder %v342, %v342
    %vm521 = vcmp.ne.f32.partialorder %v347, %v347
    %vm522 = vcmp.ne.f32.partialorder %v352, %v352
    %vm523 = vcmp.ne.f32.partialorder %v357, %v357
    %vm524 = vcmp.ne.f32.partialorder %v362, %v362
    %vm525 = vcmp.ne.f32.partialorder %v367, %v367
    %vm526 = vcmp.ne.f32.partialorder %v372, %v372
    %vm527 = vcmp.ne.f32.partialorder %v377, %v377
    %vm528 = vcmp.ne.f32.partialorder %v382, %v382
    %vm529 = vcmp.ne.f32.partialorder %v387, %v387
    %vm530 = vcmp.ne.f32.partialorder %v392, %v392
    %vm531 = vcmp.ne.f32.partialorder %v397, %v397
    %vm532 = vcmp.ne.f32.partialorder %v402, %v402
    %vm533 = vcmp.ne.f32.partialorder %v407, %v407
    %vm534 = vcmp.ne.f32.partialorder %v412, %v412
    %vm535 = vcmp.ne.f32.partialorder %v417, %v417
    %vm536 = vcmp.ne.f32.partialorder %v422, %v422
    %vm537 = vcmp.ne.f32.partialorder %v427, %v427
    %vm538 = vcmp.ne.f32.partialorder %v432, %v432
    %vm539 = vcmp.ne.f32.partialorder %v437, %v437
    %vm540 = vcmp.ne.f32.partialorder %v442, %v442
    %vm541 = vcmp.ne.f32.partialorder %v447, %v447
    %vm542 = vcmp.ne.f32.partialorder %v452, %v452
    %vm543 = vcmp.ne.f32.partialorder %v457, %v457
    %vm544 = vcmp.ne.f32.partialorder %v462, %v462
    %vm545 = vcmp.ne.f32.partialorder %v467, %v467
    %vm546 = vcmp.ne.f32.partialorder %v472, %v472
    %vm547 = vcmp.ne.f32.partialorder %v477, %v477
    %vm548 = vcmp.ne.f32.partialorder %v482, %v482
    %v549 = vadd.f32 %v327, 0.0
    %v550 = vadd.f32 %v332, 0.0
    %v551 = vadd.f32 %v337, 0.0
    %v552 = vadd.f32 %v342, 0.0
    %v553 = vadd.f32 %v347, 0.0
    %v554 = vadd.f32 %v352, 0.0
    %v555 = vadd.f32 %v357, 0.0
    %v556 = vadd.f32 %v362, 0.0
    %v557 = vadd.f32 %v367, 0.0
    %v558 = vadd.f32 %v372, 0.0
    %v559 = vadd.f32 %v377, 0.0
    %v560 = vadd.f32 %v382, 0.0
    %v561 = vadd.f32 %v387, 0.0
    %v562 = vadd.f32 %v392, 0.0
    %v563 = vadd.f32 %v397, 0.0
    %v564 = vadd.f32 %v402, 0.0
    %v565 = vadd.f32 %v407, 0.0
    %v566 = vadd.f32 %v412, 0.0
    %v567 = vadd.f32 %v417, 0.0
    %v568 = vadd.f32 %v422, 0.0
    %v569 = vadd.f32 %v427, 0.0
    %v570 = vadd.f32 %v432, 0.0
    %v571 = vadd.f32 %v437, 0.0
    %v572 = vadd.f32 %v442, 0.0
    %v573 = vadd.f32 %v447, 0.0
    %v574 = vadd.f32 %v452, 0.0
    %v575 = vadd.f32 %v457, 0.0
    %v576 = vadd.f32 %v462, 0.0
    %v577 = vadd.f32 %v467, 0.0
    %v578 = vadd.f32 %v472, 0.0
    %v579 = vadd.f32 %v477, 0.0
    %v580 = vadd.f32 %v482, 0.0
    %v581 = vand.u32 2147483647, %v327
    %v582 = vand.u32 2147483647, %v332
    %v583 = vand.u32 2147483647, %v337
    %v584 = vand.u32 2147483647, %v342
    %v585 = vand.u32 2147483647, %v347
    %v586 = vand.u32 2147483647, %v352
    %v587 = vand.u32 2147483647, %v357
    %v588 = vand.u32 2147483647, %v362
    %v589 = vand.u32 2147483647, %v367
    %v590 = vand.u32 2147483647, %v372
    %v591 = vand.u32 2147483647, %v377
    %v592 = vand.u32 2147483647, %v382
    %v593 = vand.u32 2147483647, %v387
    %v594 = vand.u32 2147483647, %v392
    %v595 = vand.u32 2147483647, %v397
    %v596 = vand.u32 2147483647, %v402
    %v597 = vand.u32 2147483647, %v407
    %v598 = vand.u32 2147483647, %v412
    %v599 = vand.u32 2147483647, %v417
    %v600 = vand.u32 2147483647, %v422
    %v601 = vand.u32 2147483647, %v427
    %v602 = vand.u32 2147483647, %v432
    %v603 = vand.u32 2147483647, %v437
    %v604 = vand.u32 2147483647, %v442
    %v605 = vand.u32 2147483647, %v447
    %v606 = vand.u32 2147483647, %v452
    %v607 = vand.u32 2147483647, %v457
    %v608 = vand.u32 2147483647, %v462
    %v609 = vand.u32 2147483647, %v467
    %v610 = vand.u32 2147483647, %v472
    %v611 = vand.u32 2147483647, %v477
    %v612 = vand.u32 2147483647, %v482
    %v613 = vsub.f32 0.0, %v581
    %v614 = vsub.f32 0.0, %v582
    %v615 = vsub.f32 0.0, %v583
    %v616 = vsub.f32 0.0, %v584
    %v617 = vsub.f32 0.0, %v585
    %v618 = vsub.f32 0.0, %v586
    %v619 = vsub.f32 0.0, %v587
    %v620 = vsub.f32 0.0, %v588
    %v621 = vsub.f32 0.0, %v589
    %v622 = vsub.f32 0.0, %v590
    %v623 = vsub.f32 0.0, %v591
    %v624 = vsub.f32 0.0, %v592
    %v625 = vsub.f32 0.0, %v593
    %v626 = vsub.f32 0.0, %v594
    %v627 = vsub.f32 0.0, %v595
    %v628 = vsub.f32 0.0, %v596
    %v629 = vsub.f32 0.0, %v597
    %v630 = vsub.f32 0.0, %v598
    %v631 = vsub.f32 0.0, %v599
    %v632 = vsub.f32 0.0, %v600
    %v633 = vsub.f32 0.0, %v601
    %v634 = vsub.f32 0.0, %v602
    %v635 = vsub.f32 0.0, %v603
    %v636 = vsub.f32 0.0, %v604
    %v637 = vsub.f32 0.0, %v605
    %v638 = vsub.f32 0.0, %v606
    %v639 = vsub.f32 0.0, %v607
    %v640 = vsub.f32 0.0, %v608
    %v641 = vsub.f32 0.0, %v609
    %v642 = vsub.f32 0.0, %v610
    %v643 = vsub.f32 0.0, %v611
    %v644 = vsub.f32 0.0, %v612
    %v645 = vmul.f32 %v613, 1.442695
    %v646 = vpow.pop %v645
    %v647 = vmul.f32 %v614, 1.442695
    %v648 = vpow.pop %v647
    %v649 = vmul.f32 %v615, 1.442695
    %v650 = vpow.pop %v649
    %v651 = vmul.f32 %v616, 1.442695
    %v652 = vpow.pop %v651
    %v653 = vmul.f32 %v617, 1.442695
    %v654 = vpow.pop %v653
    %v655 = vmul.f32 %v618, 1.442695
    %v656 = vpow.pop %v655
    %v657 = vmul.f32 %v619, 1.442695
    %v658 = vpow.pop %v657
    %v659 = vmul.f32 %v620, 1.442695
    %v660 = vpow.pop %v659
    %v661 = vmul.f32 %v621, 1.442695
    %v662 = vpow.pop %v661
    %v663 = vmul.f32 %v622, 1.442695
    %v664 = vpow.pop %v663
    %v665 = vmul.f32 %v623, 1.442695
    %v666 = vpow.pop %v665
    %v667 = vmul.f32 %v624, 1.442695
    %v668 = vpow.pop %v667
    %v669 = vmul.f32 %v625, 1.442695
    %v670 = vpow.pop %v669
    %v671 = vmul.f32 %v626, 1.442695
    %v672 = vpow.pop %v671
    %v673 = vmul.f32 %v627, 1.442695
    %v674 = vpow.pop %v673
    %v675 = vmul.f32 %v628, 1.442695
    %v676 = vpow.pop %v675
    %v677 = vmul.f32 %v629, 1.442695
    %v678 = vpow.pop %v677
    %v679 = vmul.f32 %v630, 1.442695
    %v680 = vpow.pop %v679
    %v681 = vmul.f32 %v631, 1.442695
    %v682 = vpow.pop %v681
    %v683 = vmul.f32 %v632, 1.442695
    %v684 = vpow.pop %v683
    %v685 = vmul.f32 %v633, 1.442695
    %v686 = vpow.pop %v685
    %v687 = vmul.f32 %v634, 1.442695
    %v688 = vpow.pop %v687
    %v689 = vmul.f32 %v635, 1.442695
    %v690 = vpow.pop %v689
    %v691 = vmul.f32 %v636, 1.442695
    %v692 = vpow.pop %v691
    %v693 = vmul.f32 %v637, 1.442695
    %v694 = vpow.pop %v693
    %v695 = vmul.f32 %v638, 1.442695
    %v696 = vpow.pop %v695
    %v697 = vmul.f32 %v639, 1.442695
    %v698 = vpow.pop %v697
    %v699 = vmul.f32 %v640, 1.442695
    %v700 = vpow.pop %v699
    %v701 = vmul.f32 %v641, 1.442695
    %v702 = vpow.pop %v701
    %v703 = vmul.f32 %v642, 1.442695
    %v704 = vpow.pop %v703
    %v705 = vmul.f32 %v643, 1.442695
    %v706 = vpow.pop %v705
    %v707 = vmul.f32 %v644, 1.442695
    %v708 = vpow.pop %v707
    %v709 = vadd.f32 %v646, 1.0
    %v710 = vlog2.pop %v709
    %v711 = vmul.f32 %v710, 0.6931472
    %v712 = vmul.f32 -0.5, %v646
    %v713 = vadd.f32 %v712, 1.0
    %v714 = vmul.f32 %v713, %v646
    %v715 = vand.u32 2147483647, %v646
    %vm716 = vcmp.lt.f32.partialorder %v715, 0.0004427343
    %v717 = vsel %vm716, %v714, %v711
    %v718 = vadd.f32 %v648, 1.0
    %v719 = vlog2.pop %v718
    %v720 = vmul.f32 %v719, 0.6931472
    %v721 = vmul.f32 -0.5, %v648
    %v722 = vadd.f32 %v721, 1.0
    %v723 = vmul.f32 %v722, %v648
    %v724 = vand.u32 2147483647, %v648
    %vm725 = vcmp.lt.f32.partialorder %v724, 0.0004427343
    %v726 = vsel %vm725, %v723, %v720
    %v727 = vadd.f32 %v650, 1.0
    %v728 = vlog2.pop %v727
    %v729 = vmul.f32 %v728, 0.6931472
    %v730 = vmul.f32 -0.5, %v650
    %v731 = vadd.f32 %v730, 1.0
    %v732 = vmul.f32 %v731, %v650
    %v733 = vand.u32 2147483647, %v650
    %vm734 = vcmp.lt.f32.partialorder %v733, 0.0004427343
    %v735 = vsel %vm734, %v732, %v729
    %v736 = vadd.f32 %v652, 1.0
    %v737 = vlog2.pop %v736
    %v738 = vmul.f32 %v737, 0.6931472
    %v739 = vmul.f32 -0.5, %v652
    %v740 = vadd.f32 %v739, 1.0
    %v741 = vmul.f32 %v740, %v652
    %v742 = vand.u32 2147483647, %v652
    %vm743 = vcmp.lt.f32.partialorder %v742, 0.0004427343
    %v744 = vsel %vm743, %v741, %v738
    %v745 = vadd.f32 %v654, 1.0
    %v746 = vlog2.pop %v745
    %v747 = vmul.f32 %v746, 0.6931472
    %v748 = vmul.f32 -0.5, %v654
    %v749 = vadd.f32 %v748, 1.0
    %v750 = vmul.f32 %v749, %v654
    %v751 = vand.u32 2147483647, %v654
    %vm752 = vcmp.lt.f32.partialorder %v751, 0.0004427343
    %v753 = vsel %vm752, %v750, %v747
    %v754 = vadd.f32 %v656, 1.0
    %v755 = vlog2.pop %v754
    %v756 = vmul.f32 %v755, 0.6931472
    %v757 = vmul.f32 -0.5, %v656
    %v758 = vadd.f32 %v757, 1.0
    %v759 = vmul.f32 %v758, %v656
    %v760 = vand.u32 2147483647, %v656
    %vm761 = vcmp.lt.f32.partialorder %v760, 0.0004427343
    %v762 = vsel %vm761, %v759, %v756
    %v763 = vadd.f32 %v658, 1.0
    %v764 = vlog2.pop %v763
    %v765 = vmul.f32 %v764, 0.6931472
    %v766 = vmul.f32 -0.5, %v658
    %v767 = vadd.f32 %v766, 1.0
    %v768 = vmul.f32 %v767, %v658
    %v769 = vand.u32 2147483647, %v658
    %vm770 = vcmp.lt.f32.partialorder %v769, 0.0004427343
    %v771 = vsel %vm770, %v768, %v765
    %v772 = vadd.f32 %v660, 1.0
    %v773 = vlog2.pop %v772
    %v774 = vmul.f32 %v773, 0.6931472
    %v775 = vmul.f32 -0.5, %v660
    %v776 = vadd.f32 %v775, 1.0
    %v777 = vmul.f32 %v776, %v660
    %v778 = vand.u32 2147483647, %v660
    %vm779 = vcmp.lt.f32.partialorder %v778, 0.0004427343
    %v780 = vsel %vm779, %v777, %v774
    %v781 = vadd.f32 %v662, 1.0
    %v782 = vlog2.pop %v781
    %v783 = vmul.f32 %v782, 0.6931472
    %v784 = vmul.f32 -0.5, %v662
    %v785 = vadd.f32 %v784, 1.0
    %v786 = vmul.f32 %v785, %v662
    %v787 = vand.u32 2147483647, %v662
    %vm788 = vcmp.lt.f32.partialorder %v787, 0.0004427343
    %v789 = vsel %vm788, %v786, %v783
    %v790 = vadd.f32 %v664, 1.0
    %v791 = vlog2.pop %v790
    %v792 = vmul.f32 %v791, 0.6931472
    %v793 = vmul.f32 -0.5, %v664
    %v794 = vadd.f32 %v793, 1.0
    %v795 = vmul.f32 %v794, %v664
    %v796 = vand.u32 2147483647, %v664
    %vm797 = vcmp.lt.f32.partialorder %v796, 0.0004427343
    %v798 = vsel %vm797, %v795, %v792
    %v799 = vadd.f32 %v666, 1.0
    %v800 = vlog2.pop %v799
    %v801 = vmul.f32 %v800, 0.6931472
    %v802 = vmul.f32 -0.5, %v666
    %v803 = vadd.f32 %v802, 1.0
    %v804 = vmul.f32 %v803, %v666
    %v805 = vand.u32 2147483647, %v666
    %vm806 = vcmp.lt.f32.partialorder %v805, 0.0004427343
    %v807 = vsel %vm806, %v804, %v801
    %v808 = vadd.f32 %v668, 1.0
    %v809 = vlog2.pop %v808
    %v810 = vmul.f32 %v809, 0.6931472
    %v811 = vmul.f32 -0.5, %v668
    %v812 = vadd.f32 %v811, 1.0
    %v813 = vmul.f32 %v812, %v668
    %v814 = vand.u32 2147483647, %v668
    %vm815 = vcmp.lt.f32.partialorder %v814, 0.0004427343
    %v816 = vsel %vm815, %v813, %v810
    %v817 = vadd.f32 %v670, 1.0
    %v818 = vlog2.pop %v817
    %v819 = vmul.f32 %v818, 0.6931472
    %v820 = vmul.f32 -0.5, %v670
    %v821 = vadd.f32 %v820, 1.0
    %v822 = vmul.f32 %v821, %v670
    %v823 = vand.u32 2147483647, %v670
    %vm824 = vcmp.lt.f32.partialorder %v823, 0.0004427343
    %v825 = vsel %vm824, %v822, %v819
    %v826 = vadd.f32 %v672, 1.0
    %v827 = vlog2.pop %v826
    %v828 = vmul.f32 %v827, 0.6931472
    %v829 = vmul.f32 -0.5, %v672
    %v830 = vadd.f32 %v829, 1.0
    %v831 = vmul.f32 %v830, %v672
    %v832 = vand.u32 2147483647, %v672
    %vm833 = vcmp.lt.f32.partialorder %v832, 0.0004427343
    %v834 = vsel %vm833, %v831, %v828
    %v835 = vadd.f32 %v674, 1.0
    %v836 = vlog2.pop %v835
    %v837 = vmul.f32 %v836, 0.6931472
    %v838 = vmul.f32 -0.5, %v674
    %v839 = vadd.f32 %v838, 1.0
    %v840 = vmul.f32 %v839, %v674
    %v841 = vand.u32 2147483647, %v674
    %vm842 = vcmp.lt.f32.partialorder %v841, 0.0004427343
    %v843 = vsel %vm842, %v840, %v837
    %v844 = vadd.f32 %v676, 1.0
    %v845 = vlog2.pop %v844
    %v846 = vmul.f32 %v845, 0.6931472
    %v847 = vmul.f32 -0.5, %v676
    %v848 = vadd.f32 %v847, 1.0
    %v849 = vmul.f32 %v848, %v676
    %v850 = vand.u32 2147483647, %v676
    %vm851 = vcmp.lt.f32.partialorder %v850, 0.0004427343
    %v852 = vsel %vm851, %v849, %v846
    %v853 = vadd.f32 %v678, 1.0
    %v854 = vlog2.pop %v853
    %v855 = vmul.f32 %v854, 0.6931472
    %v856 = vmul.f32 -0.5, %v678
    %v857 = vadd.f32 %v856, 1.0
    %v858 = vmul.f32 %v857, %v678
    %v859 = vand.u32 2147483647, %v678
    %vm860 = vcmp.lt.f32.partialorder %v859, 0.0004427343
    %v861 = vsel %vm860, %v858, %v855
    %v862 = vadd.f32 %v680, 1.0
    %v863 = vlog2.pop %v862
    %v864 = vmul.f32 %v863, 0.6931472
    %v865 = vmul.f32 -0.5, %v680
    %v866 = vadd.f32 %v865, 1.0
    %v867 = vmul.f32 %v866, %v680
    %v868 = vand.u32 2147483647, %v680
    %vm869 = vcmp.lt.f32.partialorder %v868, 0.0004427343
    %v870 = vsel %vm869, %v867, %v864
    %v871 = vadd.f32 %v682, 1.0
    %v872 = vlog2.pop %v871
    %v873 = vmul.f32 %v872, 0.6931472
    %v874 = vmul.f32 -0.5, %v682
    %v875 = vadd.f32 %v874, 1.0
    %v876 = vmul.f32 %v875, %v682
    %v877 = vand.u32 2147483647, %v682
    %vm878 = vcmp.lt.f32.partialorder %v877, 0.0004427343
    %v879 = vsel %vm878, %v876, %v873
    %v880 = vadd.f32 %v684, 1.0
    %v881 = vlog2.pop %v880
    %v882 = vmul.f32 %v881, 0.6931472
    %v883 = vmul.f32 -0.5, %v684
    %v884 = vadd.f32 %v883, 1.0
    %v885 = vmul.f32 %v884, %v684
    %v886 = vand.u32 2147483647, %v684
    %vm887 = vcmp.lt.f32.partialorder %v886, 0.0004427343
    %v888 = vsel %vm887, %v885, %v882
    %v889 = vadd.f32 %v686, 1.0
    %v890 = vlog2.pop %v889
    %v891 = vmul.f32 %v890, 0.6931472
    %v892 = vmul.f32 -0.5, %v686
    %v893 = vadd.f32 %v892, 1.0
    %v894 = vmul.f32 %v893, %v686
    %v895 = vand.u32 2147483647, %v686
    %vm896 = vcmp.lt.f32.partialorder %v895, 0.0004427343
    %v897 = vsel %vm896, %v894, %v891
    %v898 = vadd.f32 %v688, 1.0
    %v899 = vlog2.pop %v898
    %v900 = vmul.f32 %v899, 0.6931472
    %v901 = vmul.f32 -0.5, %v688
    %v902 = vadd.f32 %v901, 1.0
    %v903 = vmul.f32 %v902, %v688
    %v904 = vand.u32 2147483647, %v688
    %vm905 = vcmp.lt.f32.partialorder %v904, 0.0004427343
    %v906 = vsel %vm905, %v903, %v900
    %v907 = vadd.f32 %v690, 1.0
    %v908 = vlog2.pop %v907
    %v909 = vmul.f32 %v908, 0.6931472
    %v910 = vmul.f32 -0.5, %v690
    %v911 = vadd.f32 %v910, 1.0
    %v912 = vmul.f32 %v911, %v690
    %v913 = vand.u32 2147483647, %v690
    %vm914 = vcmp.lt.f32.partialorder %v913, 0.0004427343
    %v915 = vsel %vm914, %v912, %v909
    %v916 = vadd.f32 %v692, 1.0
    %v917 = vlog2.pop %v916
    %v918 = vmul.f32 %v917, 0.6931472
    %v919 = vmul.f32 -0.5, %v692
    %v920 = vadd.f32 %v919, 1.0
    %v921 = vmul.f32 %v920, %v692
    %v922 = vand.u32 2147483647, %v692
    %vm923 = vcmp.lt.f32.partialorder %v922, 0.0004427343
    %v924 = vsel %vm923, %v921, %v918
    %v925 = vadd.f32 %v694, 1.0
    %v926 = vlog2.pop %v925
    %v927 = vmul.f32 %v926, 0.6931472
    %v928 = vmul.f32 -0.5, %v694
    %v929 = vadd.f32 %v928, 1.0
    %v930 = vmul.f32 %v929, %v694
    %v931 = vand.u32 2147483647, %v694
    %vm932 = vcmp.lt.f32.partialorder %v931, 0.0004427343
    %v933 = vsel %vm932, %v930, %v927
    %v934 = vadd.f32 %v696, 1.0
    %v935 = vlog2.pop %v934
    %v936 = vmul.f32 %v935, 0.6931472
    %v937 = vmul.f32 -0.5, %v696
    %v938 = vadd.f32 %v937, 1.0
    %v939 = vmul.f32 %v938, %v696
    %v940 = vand.u32 2147483647, %v696
    %vm941 = vcmp.lt.f32.partialorder %v940, 0.0004427343
    %v942 = vsel %vm941, %v939, %v936
    %v943 = vadd.f32 %v698, 1.0
    %v944 = vlog2.pop %v943
    %v945 = vmul.f32 %v944, 0.6931472
    %v946 = vmul.f32 -0.5, %v698
    %v947 = vadd.f32 %v946, 1.0
    %v948 = vmul.f32 %v947, %v698
    %v949 = vand.u32 2147483647, %v698
    %vm950 = vcmp.lt.f32.partialorder %v949, 0.0004427343
    %v951 = vsel %vm950, %v948, %v945
    %v952 = vadd.f32 %v700, 1.0
    %v953 = vlog2.pop %v952
    %v954 = vmul.f32 %v953, 0.6931472
    %v955 = vmul.f32 -0.5, %v700
    %v956 = vadd.f32 %v955, 1.0
    %v957 = vmul.f32 %v956, %v700
    %v958 = vand.u32 2147483647, %v700
    %vm959 = vcmp.lt.f32.partialorder %v958, 0.0004427343
    %v960 = vsel %vm959, %v957, %v954
    %v961 = vadd.f32 %v702, 1.0
    %v962 = vlog2.pop %v961
    %v963 = vmul.f32 %v962, 0.6931472
    %v964 = vmul.f32 -0.5, %v702
    %v965 = vadd.f32 %v964, 1.0
    %v966 = vmul.f32 %v965, %v702
    %v967 = vand.u32 2147483647, %v702
    %vm968 = vcmp.lt.f32.partialorder %v967, 0.0004427343
    %v969 = vsel %vm968, %v966, %v963
    %v970 = vadd.f32 %v704, 1.0
    %v971 = vlog2.pop %v970
    %v972 = vmul.f32 %v971, 0.6931472
    %v973 = vmul.f32 -0.5, %v704
    %v974 = vadd.f32 %v973, 1.0
    %v975 = vmul.f32 %v974, %v704
    %v976 = vand.u32 2147483647, %v704
    %vm977 = vcmp.lt.f32.partialorder %v976, 0.0004427343
    %v978 = vsel %vm977, %v975, %v972
    %v979 = vadd.f32 %v706, 1.0
    %v980 = vlog2.pop %v979
    %v981 = vmul.f32 %v980, 0.6931472
    %v982 = vmul.f32 -0.5, %v706
    %v983 = vadd.f32 %v982, 1.0
    %v984 = vmul.f32 %v983, %v706
    %v985 = vand.u32 2147483647, %v706
    %vm986 = vcmp.lt.f32.partialorder %v985, 0.0004427343
    %v987 = vsel %vm986, %v984, %v981
    %v988 = vadd.f32 %v708, 1.0
    %v989 = vlog2.pop %v988
    %v990 = vmul.f32 %v989, 0.6931472
    %v991 = vmul.f32 -0.5, %v708
    %v992 = vadd.f32 %v991, 1.0
    %v993 = vmul.f32 %v992, %v708
    %v994 = vand.u32 2147483647, %v708
    %vm995 = vcmp.lt.f32.partialorder %v994, 0.0004427343
    %v996 = vsel %vm995, %v993, %v990
    %v997 = vadd.f32 %v485, %v717
    %v998 = vadd.f32 %v486, %v726
    %v999 = vadd.f32 %v487, %v735
    %v1000 = vadd.f32 %v488, %v744
    %v1001 = vadd.f32 %v489, %v753
    %v1002 = vadd.f32 %v490, %v762
    %v1003 = vadd.f32 %v491, %v771
    %v1004 = vadd.f32 %v492, %v780
    %v1005 = vadd.f32 %v493, %v789
    %v1006 = vadd.f32 %v494, %v798
    %v1007 = vadd.f32 %v495, %v807
    %v1008 = vadd.f32 %v496, %v816
    %v1009 = vadd.f32 %v497, %v825
    %v1010 = vadd.f32 %v498, %v834
    %v1011 = vadd.f32 %v499, %v843
    %v1012 = vadd.f32 %v500, %v852
    %v1013 = vadd.f32 %v501, %v861
    %v1014 = vadd.f32 %v502, %v870
    %v1015 = vadd.f32 %v503, %v879
    %v1016 = vadd.f32 %v504, %v888
    %v1017 = vadd.f32 %v505, %v897
    %v1018 = vadd.f32 %v506, %v906
    %v1019 = vadd.f32 %v507, %v915
    %v1020 = vadd.f32 %v508, %v924
    %v1021 = vadd.f32 %v509, %v933
    %v1022 = vadd.f32 %v510, %v942
    %v1023 = vadd.f32 %v511, %v951
    %v1024 = vadd.f32 %v512, %v960
    %v1025 = vadd.f32 %v513, %v969
    %v1026 = vadd.f32 %v514, %v978
    %v1027 = vadd.f32 %v515, %v987
    %v1028 = vadd.f32 %v516, %v996
    %v1029 = vsel %vm517, %v549, %v997
    %v1030 = vsel %vm518, %v550, %v998
    %v1031 = vsel %vm519, %v551, %v999
    %v1032 = vsel %vm520, %v552, %v1000
    %v1033 = vsel %vm521, %v553, %v1001
    %v1034 = vsel %vm522, %v554, %v1002
    %v1035 = vsel %vm523, %v555, %v1003
    %v1036 = vsel %vm524, %v556, %v1004
    %v1037 = vsel %vm525, %v557, %v1005
    %v1038 = vsel %vm526, %v558, %v1006
    %v1039 = vsel %vm527, %v559, %v1007
    %v1040 = vsel %vm528, %v560, %v1008
    %v1041 = vsel %vm529, %v561, %v1009
    %v1042 = vsel %vm530, %v562, %v1010
    %v1043 = vsel %vm531, %v563, %v1011
    %v1044 = vsel %vm532, %v564, %v1012
    %v1045 = vsel %vm533, %v565, %v1013
    %v1046 = vsel %vm534, %v566, %v1014
    %v1047 = vsel %vm535, %v567, %v1015
    %v1048 = vsel %vm536, %v568, %v1016
    %v1049 = vsel %vm537, %v569, %v1017
    %v1050 = vsel %vm538, %v570, %v1018
    %v1051 = vsel %vm539, %v571, %v1019
    %v1052 = vsel %vm540, %v572, %v1020
    %v1053 = vsel %vm541, %v573, %v1021
    %v1054 = vsel %vm542, %v574, %v1022
    %v1055 = vsel %vm543, %v575, %v1023
    %v1056 = vsel %vm544, %v576, %v1024
    %v1057 = vsel %vm545, %v577, %v1025
    %v1058 = vsel %vm546, %v578, %v1026
    %v1059 = vsel %vm547, %v579, %v1027
    %v1060 = vsel %vm548, %v580, %v1028
    %v1061 = vsub.f32 %v1029, 0.6931472
    %v1062 = vsub.f32 %v1030, 0.6931472
    %v1063 = vsub.f32 %v1031, 0.6931472
    %v1064 = vsub.f32 %v1032, 0.6931472
    %v1065 = vsub.f32 %v1033, 0.6931472
    %v1066 = vsub.f32 %v1034, 0.6931472
    %v1067 = vsub.f32 %v1035, 0.6931472
    %v1068 = vsub.f32 %v1036, 0.6931472
    %v1069 = vsub.f32 %v1037, 0.6931472
    %v1070 = vsub.f32 %v1038, 0.6931472
    %v1071 = vsub.f32 %v1039, 0.6931472
    %v1072 = vsub.f32 %v1040, 0.6931472
    %v1073 = vsub.f32 %v1041, 0.6931472
    %v1074 = vsub.f32 %v1042, 0.6931472
    %v1075 = vsub.f32 %v1043, 0.6931472
    %v1076 = vsub.f32 %v1044, 0.6931472
    %v1077 = vsub.f32 %v1045, 0.6931472
    %v1078 = vsub.f32 %v1046, 0.6931472
    %v1079 = vsub.f32 %v1047, 0.6931472
    %v1080 = vsub.f32 %v1048, 0.6931472
    %v1081 = vsub.f32 %v1049, 0.6931472
    %v1082 = vsub.f32 %v1050, 0.6931472
    %v1083 = vsub.f32 %v1051, 0.6931472
    %v1084 = vsub.f32 %v1052, 0.6931472
    %v1085 = vsub.f32 %v1053, 0.6931472
    %v1086 = vsub.f32 %v1054, 0.6931472
    %v1087 = vsub.f32 %v1055, 0.6931472
    %v1088 = vsub.f32 %v1056, 0.6931472
    %v1089 = vsub.f32 %v1057, 0.6931472
    %v1090 = vsub.f32 %v1058, 0.6931472
    %v1091 = vsub.f32 %v1059, 0.6931472
    %v1092 = vsub.f32 %v1060, 0.6931472
    %v1093 = vld [vmem:[%s7] sm:$0xff]
    %v1094 = vld [vmem:[%s7 + $0x8] sm:$0xff]
    %v1095 = vld [vmem:[%s7 + $0x10] sm:$0xff]
    %v1096 = vld [vmem:[%s7 + $0x18] sm:$0xff]
    %v1097 = vld [vmem:[%s7 + $0x20] sm:$0xff]
    %v1098 = vld [vmem:[%s7 + $0x28] sm:$0xff]
    %v1099 = vld [vmem:[%s7 + $0x30] sm:$0xff]
    %v1100 = vld [vmem:[%s7 + $0x38] sm:$0xff]
    %v1101 = vld [vmem:[%s7 + $0x40] sm:$0xff]
    %v1102 = vld [vmem:[%s7 + $0x48] sm:$0xff]
    %v1103 = vld [vmem:[%s7 + $0x50] sm:$0xff]
    %v1104 = vld [vmem:[%s7 + $0x58] sm:$0xff]
    %v1105 = vld [vmem:[%s7 + $0x60] sm:$0xff]
    %v1106 = vld [vmem:[%s7 + $0x68] sm:$0xff]
    %v1107 = vld [vmem:[%s7 + $0x70] sm:$0xff]
    %v1108 = vld [vmem:[%s7 + $0x78] sm:$0xff]
    %v1109 = vld [vmem:[%s8] sm:$0x1]
    %v1111 = vlaneseq
    %v1112 = vshrl.u32 %v1111, 7
    %v1113 = vsub.s32 0, %v1112
    %v1114 = vrot.slane %v1109, %v1113
    %1116 = vmatprep.subr.mxu0 0.0
    %1117 = vmatpush1.msra.mxu0 %v1108
    %1118 = vmatprep.subr.mxu0 0.0
    %1119 = vmatpush1.msra.mxu0 %v1107
    %1120 = vmatprep.subr.mxu0 0.0
    %1121 = vmatpush1.msra.mxu0 %v1106
    %1122 = vmatprep.subr.mxu0 0.0
    %1123 = vmatpush1.msra.mxu0 %v1105
    %1124 = vmatprep.subr.mxu0 0.0
    %1125 = vmatpush1.msra.mxu0 %v1104
    %1126 = vmatprep.subr.mxu0 0.0
    %1127 = vmatpush1.msra.mxu0 %v1103
    %1128 = vmatprep.subr.mxu0 0.0
    %1129 = vmatpush1.msra.mxu0 %v1102
    %1130 = vmatprep.subr.mxu0 0.0
    %1131 = vmatpush1.msra.mxu0 %v1101
    %1132 = vmatprep.subr.mxu0 0.0
    %1133 = vmatpush1.msra.mxu0 %v1100
    %1134 = vmatprep.subr.mxu0 0.0
    %1135 = vmatpush1.msra.mxu0 %v1099
    %1136 = vmatprep.subr.mxu0 0.0
    %1137 = vmatpush1.msra.mxu0 %v1098
    %1138 = vmatprep.subr.mxu0 0.0
    %1139 = vmatpush1.msra.mxu0 %v1097
    %1140 = vmatprep.subr.mxu0 0.0
    %1141 = vmatpush1.msra.mxu0 %v1096
    %1142 = vmatprep.subr.mxu0 0.0
    %1143 = vmatpush1.msra.mxu0 %v1095
    %1144 = vmatprep.subr.mxu0 0.0
    %1145 = vmatpush1.msra.mxu0 %v1094
    %1146 = vmatprep.subr.mxu0 0.0
    %1147 = vmatpush1.msra.mxu0 %v1093
    %1148 = vmatprep.subr.mxu0 0.0
    %1149 = vmatpush2.msra.mxu0 0.0
    %1150 = vmatprep.subr.mxu0 0.0
    %1151 = vmatpush2.msra.mxu0 0.0
    %1152 = vmatprep.subr.mxu0 0.0
    %1153 = vmatpush2.msra.mxu0 0.0
    %1154 = vmatprep.subr.mxu0 0.0
    %1155 = vmatpush2.msra.mxu0 0.0
    %1156 = vmatprep.subr.mxu0 0.0
    %1157 = vmatpush2.msra.mxu0 0.0
    %1158 = vmatprep.subr.mxu0 0.0
    %1159 = vmatpush2.msra.mxu0 0.0
    %1160 = vmatprep.subr.mxu0 0.0
    %1161 = vmatpush2.msra.mxu0 0.0
    %1162 = vmatprep.subr.mxu0 0.0
    %1163 = vmatpush2.msra.mxu0 0.0
    %1164 = vmatprep.subr.mxu0 0.0
    %1165 = vmatpush2.msra.mxu0 0.0
    %1166 = vmatprep.subr.mxu0 0.0
    %1167 = vmatpush2.msra.mxu0 0.0
    %1168 = vmatprep.subr.mxu0 0.0
    %1169 = vmatpush2.msra.mxu0 0.0
    %1170 = vmatprep.subr.mxu0 0.0
    %1171 = vmatpush2.msra.mxu0 0.0
    %1172 = vmatprep.subr.mxu0 0.0
    %1173 = vmatpush2.msra.mxu0 0.0
    %1174 = vmatprep.subr.mxu0 0.0
    %1175 = vmatpush2.msra.mxu0 0.0
    %1176 = vmatprep.subr.mxu0 0.0
    %1177 = vmatpush2.msra.mxu0 0.0
    %1178 = vmatprep.subr.mxu0 0.0
    %1179 = vmatpush2.msra.mxu0 0.0
    %1180 = vmatprep.mubr.f32.mxu0 0.0
    %1181 = vmatmul.mubr.f32.gmra.mxu0 %v1061
    %v1182 = vpop.f32.mrf.mxu0
    %v1183 = vadd.f32 %v1114, %v1182
    %v1184 = vpop.f32.mrf.mxu0
    %1185 = vmatprep.mubr.f32.mxu0 0.0
    %1186 = vmatmul.mubr.f32.gmra.mxu0 %v1062
    %v1187 = vpop.f32.mrf.mxu0
    %v1188 = vadd.f32 %v1114, %v1187
    %v1189 = vpop.f32.mrf.mxu0
    %1190 = vmatprep.mubr.f32.mxu0 0.0
    %1191 = vmatmul.mubr.f32.gmra.mxu0 %v1063
    %v1192 = vpop.f32.mrf.mxu0
    %v1193 = vadd.f32 %v1114, %v1192
    %v1194 = vpop.f32.mrf.mxu0
    %1195 = vmatprep.mubr.f32.mxu0 0.0
    %1196 = vmatmul.mubr.f32.gmra.mxu0 %v1064
    %v1197 = vpop.f32.mrf.mxu0
    %v1198 = vadd.f32 %v1114, %v1197
    %v1199 = vpop.f32.mrf.mxu0
    %1200 = vmatprep.mubr.f32.mxu0 0.0
    %1201 = vmatmul.mubr.f32.gmra.mxu0 %v1065
    %v1202 = vpop.f32.mrf.mxu0
    %v1203 = vadd.f32 %v1114, %v1202
    %v1204 = vpop.f32.mrf.mxu0
    %1205 = vmatprep.mubr.f32.mxu0 0.0
    %1206 = vmatmul.mubr.f32.gmra.mxu0 %v1066
    %v1207 = vpop.f32.mrf.mxu0
    %v1208 = vadd.f32 %v1114, %v1207
    %v1209 = vpop.f32.mrf.mxu0
    %1210 = vmatprep.mubr.f32.mxu0 0.0
    %1211 = vmatmul.mubr.f32.gmra.mxu0 %v1067
    %v1212 = vpop.f32.mrf.mxu0
    %v1213 = vadd.f32 %v1114, %v1212
    %v1214 = vpop.f32.mrf.mxu0
    %1215 = vmatprep.mubr.f32.mxu0 0.0
    %1216 = vmatmul.mubr.f32.gmra.mxu0 %v1068
    %v1217 = vpop.f32.mrf.mxu0
    %v1218 = vadd.f32 %v1114, %v1217
    %v1219 = vpop.f32.mrf.mxu0
    %1220 = vmatprep.mubr.f32.mxu0 0.0
    %1221 = vmatmul.mubr.f32.gmra.mxu0 %v1069
    %v1222 = vpop.f32.mrf.mxu0
    %v1223 = vadd.f32 %v1114, %v1222
    %v1224 = vpop.f32.mrf.mxu0
    %1225 = vmatprep.mubr.f32.mxu0 0.0
    %1226 = vmatmul.mubr.f32.gmra.mxu0 %v1070
    %v1227 = vpop.f32.mrf.mxu0
    %v1228 = vadd.f32 %v1114, %v1227
    %v1229 = vpop.f32.mrf.mxu0
    %1230 = vmatprep.mubr.f32.mxu0 0.0
    %1231 = vmatmul.mubr.f32.gmra.mxu0 %v1071
    %v1232 = vpop.f32.mrf.mxu0
    %v1233 = vadd.f32 %v1114, %v1232
    %v1234 = vpop.f32.mrf.mxu0
    %1235 = vmatprep.mubr.f32.mxu0 0.0
    %1236 = vmatmul.mubr.f32.gmra.mxu0 %v1072
    %v1237 = vpop.f32.mrf.mxu0
    %v1238 = vadd.f32 %v1114, %v1237
    %v1239 = vpop.f32.mrf.mxu0
    %1240 = vmatprep.mubr.f32.mxu0 0.0
    %1241 = vmatmul.mubr.f32.gmra.mxu0 %v1073
    %v1242 = vpop.f32.mrf.mxu0
    %v1243 = vadd.f32 %v1114, %v1242
    %v1244 = vpop.f32.mrf.mxu0
    %1245 = vmatprep.mubr.f32.mxu0 0.0
    %1246 = vmatmul.mubr.f32.gmra.mxu0 %v1074
    %v1247 = vpop.f32.mrf.mxu0
    %v1248 = vadd.f32 %v1114, %v1247
    %v1249 = vpop.f32.mrf.mxu0
    %1250 = vmatprep.mubr.f32.mxu0 0.0
    %1251 = vmatmul.mubr.f32.gmra.mxu0 %v1075
    %v1252 = vpop.f32.mrf.mxu0
    %v1253 = vadd.f32 %v1114, %v1252
    %v1254 = vpop.f32.mrf.mxu0
    %1255 = vmatprep.mubr.f32.mxu0 0.0
    %1256 = vmatmul.mubr.f32.gmra.mxu0 %v1076
    %v1257 = vpop.f32.mrf.mxu0
    %v1258 = vadd.f32 %v1114, %v1257
    %v1259 = vpop.f32.mrf.mxu0
    %1260 = vmatprep.mubr.f32.mxu0 0.0
    %1261 = vmatmul.mubr.f32.gmra.mxu0 %v1077
    %v1262 = vpop.f32.mrf.mxu0
    %v1263 = vadd.f32 %v1114, %v1262
    %v1264 = vpop.f32.mrf.mxu0
    %1265 = vmatprep.mubr.f32.mxu0 0.0
    %1266 = vmatmul.mubr.f32.gmra.mxu0 %v1078
    %v1267 = vpop.f32.mrf.mxu0
    %v1268 = vadd.f32 %v1114, %v1267
    %v1269 = vpop.f32.mrf.mxu0
    %1270 = vmatprep.mubr.f32.mxu0 0.0
    %1271 = vmatmul.mubr.f32.gmra.mxu0 %v1079
    %v1272 = vpop.f32.mrf.mxu0
    %v1273 = vadd.f32 %v1114, %v1272
    %v1274 = vpop.f32.mrf.mxu0
    %1275 = vmatprep.mubr.f32.mxu0 0.0
    %1276 = vmatmul.mubr.f32.gmra.mxu0 %v1080
    %v1277 = vpop.f32.mrf.mxu0
    %v1278 = vadd.f32 %v1114, %v1277
    %v1279 = vpop.f32.mrf.mxu0
    %1280 = vmatprep.mubr.f32.mxu0 0.0
    %1281 = vmatmul.mubr.f32.gmra.mxu0 %v1081
    %v1282 = vpop.f32.mrf.mxu0
    %v1283 = vadd.f32 %v1114, %v1282
    %v1284 = vpop.f32.mrf.mxu0
    %1285 = vmatprep.mubr.f32.mxu0 0.0
    %1286 = vmatmul.mubr.f32.gmra.mxu0 %v1082
    %v1287 = vpop.f32.mrf.mxu0
    %v1288 = vadd.f32 %v1114, %v1287
    %v1289 = vpop.f32.mrf.mxu0
    %1290 = vmatprep.mubr.f32.mxu0 0.0
    %1291 = vmatmul.mubr.f32.gmra.mxu0 %v1083
    %v1292 = vpop.f32.mrf.mxu0
    %v1293 = vadd.f32 %v1114, %v1292
    %v1294 = vpop.f32.mrf.mxu0
    %1295 = vmatprep.mubr.f32.mxu0 0.0
    %1296 = vmatmul.mubr.f32.gmra.mxu0 %v1084
    %v1297 = vpop.f32.mrf.mxu0
    %v1298 = vadd.f32 %v1114, %v1297
    %v1299 = vpop.f32.mrf.mxu0
    %1300 = vmatprep.mubr.f32.mxu0 0.0
    %1301 = vmatmul.mubr.f32.gmra.mxu0 %v1085
    %v1302 = vpop.f32.mrf.mxu0
    %v1303 = vadd.f32 %v1114, %v1302
    %v1304 = vpop.f32.mrf.mxu0
    %1305 = vmatprep.mubr.f32.mxu0 0.0
    %1306 = vmatmul.mubr.f32.gmra.mxu0 %v1086
    %v1307 = vpop.f32.mrf.mxu0
    %v1308 = vadd.f32 %v1114, %v1307
    %v1309 = vpop.f32.mrf.mxu0
    %1310 = vmatprep.mubr.f32.mxu0 0.0
    %1311 = vmatmul.mubr.f32.gmra.mxu0 %v1087
    %v1312 = vpop.f32.mrf.mxu0
    %v1313 = vadd.f32 %v1114, %v1312
    %v1314 = vpop.f32.mrf.mxu0
    %1315 = vmatprep.mubr.f32.mxu0 0.0
    %1316 = vmatmul.mubr.f32.gmra.mxu0 %v1088
    %v1317 = vpop.f32.mrf.mxu0
    %v1318 = vadd.f32 %v1114, %v1317
    %v1319 = vpop.f32.mrf.mxu0
    %1320 = vmatprep.mubr.f32.mxu0 0.0
    %1321 = vmatmul.mubr.f32.gmra.mxu0 %v1089
    %v1322 = vpop.f32.mrf.mxu0
    %v1323 = vadd.f32 %v1114, %v1322
    %v1324 = vpop.f32.mrf.mxu0
    %1325 = vmatprep.mubr.f32.mxu0 0.0
    %1326 = vmatmul.mubr.f32.gmra.mxu0 %v1090
    %v1327 = vpop.f32.mrf.mxu0
    %v1328 = vadd.f32 %v1114, %v1327
    %v1329 = vpop.f32.mrf.mxu0
    %1330 = vmatprep.mubr.f32.mxu0 0.0
    %1331 = vmatmul.mubr.f32.gmra.mxu0 %v1091
    %v1332 = vpop.f32.mrf.mxu0
    %v1333 = vadd.f32 %v1114, %v1332
    %v1334 = vpop.f32.mrf.mxu0
    %1335 = vmatprep.mubr.f32.mxu0 0.0
    %1336 = vmatmul.mubr.f32.gmra.mxu0 %v1092
    %v1337 = vpop.f32.mrf.mxu0
    %v1338 = vadd.f32 %v1114, %v1337
    %v1339 = vpop.f32.mrf.mxu0
    %1340 = vdwg.mxu0
    %v1341 = vld [vmem:[%s115] sm:$0xff]
    %v1342 = vld [vmem:[%s115 + $0x8] sm:$0xff]
    %v1343 = vld [vmem:[%s115 + $0x10] sm:$0xff]
    %v1344 = vld [vmem:[%s115 + $0x18] sm:$0xff]
    %v1345 = vld [vmem:[%s115 + $0x20] sm:$0xff]
    %v1346 = vld [vmem:[%s115 + $0x28] sm:$0xff]
    %v1347 = vld [vmem:[%s115 + $0x30] sm:$0xff]
    %v1348 = vld [vmem:[%s115 + $0x38] sm:$0xff]
    %v1349 = vld [vmem:[%s115 + $0x40] sm:$0xff]
    %v1350 = vld [vmem:[%s115 + $0x48] sm:$0xff]
    %v1351 = vld [vmem:[%s115 + $0x50] sm:$0xff]
    %v1352 = vld [vmem:[%s115 + $0x58] sm:$0xff]
    %v1353 = vld [vmem:[%s115 + $0x60] sm:$0xff]
    %v1354 = vld [vmem:[%s115 + $0x68] sm:$0xff]
    %v1355 = vld [vmem:[%s115 + $0x70] sm:$0xff]
    %v1356 = vld [vmem:[%s115 + $0x78] sm:$0xff]
    %v1357 = vld [vmem:[%s115 + $0x80] sm:$0xff]
    %v1358 = vld [vmem:[%s115 + $0x88] sm:$0xff]
    %v1359 = vld [vmem:[%s115 + $0x90] sm:$0xff]
    %v1360 = vld [vmem:[%s115 + $0x98] sm:$0xff]
    %v1361 = vld [vmem:[%s115 + $0xa0] sm:$0xff]
    %v1362 = vld [vmem:[%s115 + $0xa8] sm:$0xff]
    %v1363 = vld [vmem:[%s115 + $0xb0] sm:$0xff]
    %v1364 = vld [vmem:[%s115 + $0xb8] sm:$0xff]
    %v1365 = vld [vmem:[%s115 + $0xc0] sm:$0xff]
    %v1366 = vld [vmem:[%s115 + $0xc8] sm:$0xff]
    %v1367 = vld [vmem:[%s115 + $0xd0] sm:$0xff]
    %v1368 = vld [vmem:[%s115 + $0xd8] sm:$0xff]
    %v1369 = vld [vmem:[%s115 + $0xe0] sm:$0xff]
    %v1370 = vld [vmem:[%s115 + $0xe8] sm:$0xff]
    %v1371 = vld [vmem:[%s115 + $0xf0] sm:$0xff]
    %v1372 = vld [vmem:[%s115 + $0xf8] sm:$0xff]
    %1374 = vset.pattern.permute.xlu0 0
    %1375 = vperm.xlu0 %1374, %v1341
    %v1376 = vpop.permute.xlu0 %1375
    %1379 = vset.pattern.permute.xlu0 0
    %1380 = vperm.xlu0 %1379, %v1342
    %v1381 = vpop.permute.xlu0 %1380
    %1384 = vset.pattern.permute.xlu0 0
    %1385 = vperm.xlu0 %1384, %v1343
    %v1386 = vpop.permute.xlu0 %1385
    %1389 = vset.pattern.permute.xlu0 0
    %1390 = vperm.xlu0 %1389, %v1344
    %v1391 = vpop.permute.xlu0 %1390
    %1394 = vset.pattern.permute.xlu0 0
    %1395 = vperm.xlu0 %1394, %v1345
    %v1396 = vpop.permute.xlu0 %1395
    %1399 = vset.pattern.permute.xlu0 0
    %1400 = vperm.xlu0 %1399, %v1346
    %v1401 = vpop.permute.xlu0 %1400
    %1404 = vset.pattern.permute.xlu0 0
    %1405 = vperm.xlu0 %1404, %v1347
    %v1406 = vpop.permute.xlu0 %1405
    %1409 = vset.pattern.permute.xlu0 0
    %1410 = vperm.xlu0 %1409, %v1348
    %v1411 = vpop.permute.xlu0 %1410
    %1414 = vset.pattern.permute.xlu0 0
    %1415 = vperm.xlu0 %1414, %v1349
    %v1416 = vpop.permute.xlu0 %1415
    %1419 = vset.pattern.permute.xlu0 0
    %1420 = vperm.xlu0 %1419, %v1350
    %v1421 = vpop.permute.xlu0 %1420
    %1424 = vset.pattern.permute.xlu0 0
    %1425 = vperm.xlu0 %1424, %v1351
    %v1426 = vpop.permute.xlu0 %1425
    %1429 = vset.pattern.permute.xlu0 0
    %1430 = vperm.xlu0 %1429, %v1352
    %v1431 = vpop.permute.xlu0 %1430
    %1434 = vset.pattern.permute.xlu0 0
    %1435 = vperm.xlu0 %1434, %v1353
    %v1436 = vpop.permute.xlu0 %1435
    %1439 = vset.pattern.permute.xlu0 0
    %1440 = vperm.xlu0 %1439, %v1354
    %v1441 = vpop.permute.xlu0 %1440
    %1444 = vset.pattern.permute.xlu0 0
    %1445 = vperm.xlu0 %1444, %v1355
    %v1446 = vpop.permute.xlu0 %1445
    %1449 = vset.pattern.permute.xlu0 0
    %1450 = vperm.xlu0 %1449, %v1356
    %v1451 = vpop.permute.xlu0 %1450
    %1454 = vset.pattern.permute.xlu0 0
    %1455 = vperm.xlu0 %1454, %v1357
    %v1456 = vpop.permute.xlu0 %1455
    %1459 = vset.pattern.permute.xlu0 0
    %1460 = vperm.xlu0 %1459, %v1358
    %v1461 = vpop.permute.xlu0 %1460
    %1464 = vset.pattern.permute.xlu0 0
    %1465 = vperm.xlu0 %1464, %v1359
    %v1466 = vpop.permute.xlu0 %1465
    %1469 = vset.pattern.permute.xlu0 0
    %1470 = vperm.xlu0 %1469, %v1360
    %v1471 = vpop.permute.xlu0 %1470
    %1474 = vset.pattern.permute.xlu0 0
    %1475 = vperm.xlu0 %1474, %v1361
    %v1476 = vpop.permute.xlu0 %1475
    %1479 = vset.pattern.permute.xlu0 0
    %1480 = vperm.xlu0 %1479, %v1362
    %v1481 = vpop.permute.xlu0 %1480
    %1484 = vset.pattern.permute.xlu0 0
    %1485 = vperm.xlu0 %1484, %v1363
    %v1486 = vpop.permute.xlu0 %1485
    %1489 = vset.pattern.permute.xlu0 0
    %1490 = vperm.xlu0 %1489, %v1364
    %v1491 = vpop.permute.xlu0 %1490
    %1494 = vset.pattern.permute.xlu0 0
    %1495 = vperm.xlu0 %1494, %v1365
    %v1496 = vpop.permute.xlu0 %1495
    %1499 = vset.pattern.permute.xlu0 0
    %1500 = vperm.xlu0 %1499, %v1366
    %v1501 = vpop.permute.xlu0 %1500
    %1504 = vset.pattern.permute.xlu0 0
    %1505 = vperm.xlu0 %1504, %v1367
    %v1506 = vpop.permute.xlu0 %1505
    %1509 = vset.pattern.permute.xlu0 0
    %1510 = vperm.xlu0 %1509, %v1368
    %v1511 = vpop.permute.xlu0 %1510
    %1514 = vset.pattern.permute.xlu0 0
    %1515 = vperm.xlu0 %1514, %v1369
    %v1516 = vpop.permute.xlu0 %1515
    %1519 = vset.pattern.permute.xlu0 0
    %1520 = vperm.xlu0 %1519, %v1370
    %v1521 = vpop.permute.xlu0 %1520
    %1524 = vset.pattern.permute.xlu0 0
    %1525 = vperm.xlu0 %1524, %v1371
    %v1526 = vpop.permute.xlu0 %1525
    %1529 = vset.pattern.permute.xlu0 0
    %1530 = vperm.xlu0 %1529, %v1372
    %v1531 = vpop.permute.xlu0 %1530
    %v1533 = vmul.f32 %v1183, %v1376
    %v1534 = vmul.f32 %v1188, %v1381
    %v1535 = vmul.f32 %v1193, %v1386
    %v1536 = vmul.f32 %v1198, %v1391
    %v1537 = vmul.f32 %v1203, %v1396
    %v1538 = vmul.f32 %v1208, %v1401
    %v1539 = vmul.f32 %v1213, %v1406
    %v1540 = vmul.f32 %v1218, %v1411
    %v1541 = vmul.f32 %v1223, %v1416
    %v1542 = vmul.f32 %v1228, %v1421
    %v1543 = vmul.f32 %v1233, %v1426
    %v1544 = vmul.f32 %v1238, %v1431
    %v1545 = vmul.f32 %v1243, %v1436
    %v1546 = vmul.f32 %v1248, %v1441
    %v1547 = vmul.f32 %v1253, %v1446
    %v1548 = vmul.f32 %v1258, %v1451
    %v1549 = vmul.f32 %v1263, %v1456
    %v1550 = vmul.f32 %v1268, %v1461
    %v1551 = vmul.f32 %v1273, %v1466
    %v1552 = vmul.f32 %v1278, %v1471
    %v1553 = vmul.f32 %v1283, %v1476
    %v1554 = vmul.f32 %v1288, %v1481
    %v1555 = vmul.f32 %v1293, %v1486
    %v1556 = vmul.f32 %v1298, %v1491
    %v1557 = vmul.f32 %v1303, %v1496
    %v1558 = vmul.f32 %v1308, %v1501
    %v1559 = vmul.f32 %v1313, %v1506
    %v1560 = vmul.f32 %v1318, %v1511
    %v1561 = vmul.f32 %v1323, %v1516
    %v1562 = vmul.f32 %v1328, %v1521
    %v1563 = vmul.f32 %v1333, %v1526
    %v1564 = vmul.f32 %v1338, %v1531
    %v1565 = vld [vmem:[%s99] sm:$0xff]
    %v1566 = vld [vmem:[%s99 + $0x8] sm:$0xff]
    %v1567 = vld [vmem:[%s99 + $0x10] sm:$0xff]
    %v1568 = vld [vmem:[%s99 + $0x18] sm:$0xff]
    %v1569 = vld [vmem:[%s99 + $0x20] sm:$0xff]
    %v1570 = vld [vmem:[%s99 + $0x28] sm:$0xff]
    %v1571 = vld [vmem:[%s99 + $0x30] sm:$0xff]
    %v1572 = vld [vmem:[%s99 + $0x38] sm:$0xff]
    %v1573 = vld [vmem:[%s99 + $0x40] sm:$0xff]
    %v1574 = vld [vmem:[%s99 + $0x48] sm:$0xff]
    %v1575 = vld [vmem:[%s99 + $0x50] sm:$0xff]
    %v1576 = vld [vmem:[%s99 + $0x58] sm:$0xff]
    %v1577 = vld [vmem:[%s99 + $0x60] sm:$0xff]
    %v1578 = vld [vmem:[%s99 + $0x68] sm:$0xff]
    %v1579 = vld [vmem:[%s99 + $0x70] sm:$0xff]
    %v1580 = vld [vmem:[%s99 + $0x78] sm:$0xff]
    %v1581 = vld [vmem:[%s99 + $0x80] sm:$0xff]
    %v1582 = vld [vmem:[%s99 + $0x88] sm:$0xff]
    %v1583 = vld [vmem:[%s99 + $0x90] sm:$0xff]
    %v1584 = vld [vmem:[%s99 + $0x98] sm:$0xff]
    %v1585 = vld [vmem:[%s99 + $0xa0] sm:$0xff]
    %v1586 = vld [vmem:[%s99 + $0xa8] sm:$0xff]
    %v1587 = vld [vmem:[%s99 + $0xb0] sm:$0xff]
    %v1588 = vld [vmem:[%s99 + $0xb8] sm:$0xff]
    %v1589 = vld [vmem:[%s99 + $0xc0] sm:$0xff]
    %v1590 = vld [vmem:[%s99 + $0xc8] sm:$0xff]
    %v1591 = vld [vmem:[%s99 + $0xd0] sm:$0xff]
    %v1592 = vld [vmem:[%s99 + $0xd8] sm:$0xff]
    %v1593 = vld [vmem:[%s99 + $0xe0] sm:$0xff]
    %v1594 = vld [vmem:[%s99 + $0xe8] sm:$0xff]
    %v1595 = vld [vmem:[%s99 + $0xf0] sm:$0xff]
    %v1596 = vld [vmem:[%s99 + $0xf8] sm:$0xff]
    %v1597 = vld [vmem:[%s91] sm:$0x3]
    %v1598 = vlaneseq
    %v1599 = vand.u32 %v1598, 127
    %1600 = vset.pattern.permute.xlu0 0
    %1601 = vperm.xlu0 %1600, %v1565
    %v1602 = vpop.permute.xlu0 %1601
    %1603 = vset.pattern.permute.xlu0 0
    %1604 = vperm.xlu0 %1603, %v1566
    %v1605 = vpop.permute.xlu0 %1604
    %1606 = vset.pattern.permute.xlu0 0
    %1607 = vperm.xlu0 %1606, %v1567
    %v1608 = vpop.permute.xlu0 %1607
    %1609 = vset.pattern.permute.xlu0 0
    %1610 = vperm.xlu0 %1609, %v1568
    %v1611 = vpop.permute.xlu0 %1610
    %1612 = vset.pattern.permute.xlu0 0
    %1613 = vperm.xlu0 %1612, %v1569
    %v1614 = vpop.permute.xlu0 %1613
    %1615 = vset.pattern.permute.xlu0 0
    %1616 = vperm.xlu0 %1615, %v1570
    %v1617 = vpop.permute.xlu0 %1616
    %1618 = vset.pattern.permute.xlu0 0
    %1619 = vperm.xlu0 %1618, %v1571
    %v1620 = vpop.permute.xlu0 %1619
    %1621 = vset.pattern.permute.xlu0 0
    %1622 = vperm.xlu0 %1621, %v1572
    %v1623 = vpop.permute.xlu0 %1622
    %1624 = vset.pattern.permute.xlu0 0
    %1625 = vperm.xlu0 %1624, %v1573
    %v1626 = vpop.permute.xlu0 %1625
    %1627 = vset.pattern.permute.xlu0 0
    %1628 = vperm.xlu0 %1627, %v1574
    %v1629 = vpop.permute.xlu0 %1628
    %1630 = vset.pattern.permute.xlu0 0
    %1631 = vperm.xlu0 %1630, %v1575
    %v1632 = vpop.permute.xlu0 %1631
    %1633 = vset.pattern.permute.xlu0 0
    %1634 = vperm.xlu0 %1633, %v1576
    %v1635 = vpop.permute.xlu0 %1634
    %1636 = vset.pattern.permute.xlu0 0
    %1637 = vperm.xlu0 %1636, %v1577
    %v1638 = vpop.permute.xlu0 %1637
    %1639 = vset.pattern.permute.xlu0 0
    %1640 = vperm.xlu0 %1639, %v1578
    %v1641 = vpop.permute.xlu0 %1640
    %1642 = vset.pattern.permute.xlu0 0
    %1643 = vperm.xlu0 %1642, %v1579
    %v1644 = vpop.permute.xlu0 %1643
    %1645 = vset.pattern.permute.xlu0 0
    %1646 = vperm.xlu0 %1645, %v1580
    %v1647 = vpop.permute.xlu0 %1646
    %1648 = vset.pattern.permute.xlu0 0
    %1649 = vperm.xlu0 %1648, %v1581
    %v1650 = vpop.permute.xlu0 %1649
    %1651 = vset.pattern.permute.xlu0 0
    %1652 = vperm.xlu0 %1651, %v1582
    %v1653 = vpop.permute.xlu0 %1652
    %1654 = vset.pattern.permute.xlu0 0
    %1655 = vperm.xlu0 %1654, %v1583
    %v1656 = vpop.permute.xlu0 %1655
    %1657 = vset.pattern.permute.xlu0 0
    %1658 = vperm.xlu0 %1657, %v1584
    %v1659 = vpop.permute.xlu0 %1658
    %1660 = vset.pattern.permute.xlu0 0
    %1661 = vperm.xlu0 %1660, %v1585
    %v1662 = vpop.permute.xlu0 %1661
    %1663 = vset.pattern.permute.xlu0 0
    %1664 = vperm.xlu0 %1663, %v1586
    %v1665 = vpop.permute.xlu0 %1664
    %1666 = vset.pattern.permute.xlu0 0
    %1667 = vperm.xlu0 %1666, %v1587
    %v1668 = vpop.permute.xlu0 %1667
    %1669 = vset.pattern.permute.xlu0 0
    %1670 = vperm.xlu0 %1669, %v1588
    %v1671 = vpop.permute.xlu0 %1670
    %1672 = vset.pattern.permute.xlu0 0
    %1673 = vperm.xlu0 %1672, %v1589
    %v1674 = vpop.permute.xlu0 %1673
    %1675 = vset.pattern.permute.xlu0 0
    %1676 = vperm.xlu0 %1675, %v1590
    %v1677 = vpop.permute.xlu0 %1676
    %1678 = vset.pattern.permute.xlu0 0
    %1679 = vperm.xlu0 %1678, %v1591
    %v1680 = vpop.permute.xlu0 %1679
    %1681 = vset.pattern.permute.xlu0 0
    %1682 = vperm.xlu0 %1681, %v1592
    %v1683 = vpop.permute.xlu0 %1682
    %1684 = vset.pattern.permute.xlu0 0
    %1685 = vperm.xlu0 %1684, %v1593
    %v1686 = vpop.permute.xlu0 %1685
    %1687 = vset.pattern.permute.xlu0 0
    %1688 = vperm.xlu0 %1687, %v1594
    %v1689 = vpop.permute.xlu0 %1688
    %1690 = vset.pattern.permute.xlu0 0
    %1691 = vperm.xlu0 %1690, %v1595
    %v1692 = vpop.permute.xlu0 %1691
    %1693 = vset.pattern.permute.xlu0 0
    %1694 = vperm.xlu0 %1693, %v1596
    %v1695 = vpop.permute.xlu0 %1694
    %vm1696 = vcmp.eq.s32.totalorder %v1599, %v1602
    %vm1697 = vcmp.eq.s32.totalorder %v1599, %v1605
    %vm1698 = vcmp.eq.s32.totalorder %v1599, %v1608
    %vm1699 = vcmp.eq.s32.totalorder %v1599, %v1611
    %vm1700 = vcmp.eq.s32.totalorder %v1599, %v1614
    %vm1701 = vcmp.eq.s32.totalorder %v1599, %v1617
    %vm1702 = vcmp.eq.s32.totalorder %v1599, %v1620
    %vm1703 = vcmp.eq.s32.totalorder %v1599, %v1623
    %vm1704 = vcmp.eq.s32.totalorder %v1599, %v1626
    %vm1705 = vcmp.eq.s32.totalorder %v1599, %v1629
    %vm1706 = vcmp.eq.s32.totalorder %v1599, %v1632
    %vm1707 = vcmp.eq.s32.totalorder %v1599, %v1635
    %vm1708 = vcmp.eq.s32.totalorder %v1599, %v1638
    %vm1709 = vcmp.eq.s32.totalorder %v1599, %v1641
    %vm1710 = vcmp.eq.s32.totalorder %v1599, %v1644
    %vm1711 = vcmp.eq.s32.totalorder %v1599, %v1647
    %vm1712 = vcmp.eq.s32.totalorder %v1599, %v1650
    %vm1713 = vcmp.eq.s32.totalorder %v1599, %v1653
    %vm1714 = vcmp.eq.s32.totalorder %v1599, %v1656
    %vm1715 = vcmp.eq.s32.totalorder %v1599, %v1659
    %vm1716 = vcmp.eq.s32.totalorder %v1599, %v1662
    %vm1717 = vcmp.eq.s32.totalorder %v1599, %v1665
    %vm1718 = vcmp.eq.s32.totalorder %v1599, %v1668
    %vm1719 = vcmp.eq.s32.totalorder %v1599, %v1671
    %vm1720 = vcmp.eq.s32.totalorder %v1599, %v1674
    %vm1721 = vcmp.eq.s32.totalorder %v1599, %v1677
    %vm1722 = vcmp.eq.s32.totalorder %v1599, %v1680
    %vm1723 = vcmp.eq.s32.totalorder %v1599, %v1683
    %vm1724 = vcmp.eq.s32.totalorder %v1599, %v1686
    %vm1725 = vcmp.eq.s32.totalorder %v1599, %v1689
    %vm1726 = vcmp.eq.s32.totalorder %v1599, %v1692
    %vm1727 = vcmp.eq.s32.totalorder %v1599, %v1695
    %v1728 = vsel %vm1696, 1, 0
    %v1729 = vsel %vm1697, 1, 0
    %v1730 = vsel %vm1698, 1, 0
    %v1731 = vsel %vm1699, 1, 0
    %v1732 = vsel %vm1700, 1, 0
    %v1733 = vsel %vm1701, 1, 0
    %v1734 = vsel %vm1702, 1, 0
    %v1735 = vsel %vm1703, 1, 0
    %v1736 = vsel %vm1704, 1, 0
    %v1737 = vsel %vm1705, 1, 0
    %v1738 = vsel %vm1706, 1, 0
    %v1739 = vsel %vm1707, 1, 0
    %v1740 = vsel %vm1708, 1, 0
    %v1741 = vsel %vm1709, 1, 0
    %v1742 = vsel %vm1710, 1, 0
    %v1743 = vsel %vm1711, 1, 0
    %v1744 = vsel %vm1712, 1, 0
    %v1745 = vsel %vm1713, 1, 0
    %v1746 = vsel %vm1714, 1, 0
    %v1747 = vsel %vm1715, 1, 0
    %v1748 = vsel %vm1716, 1, 0
    %v1749 = vsel %vm1717, 1, 0
    %v1750 = vsel %vm1718, 1, 0
    %v1751 = vsel %vm1719, 1, 0
    %v1752 = vsel %vm1720, 1, 0
    %v1753 = vsel %vm1721, 1, 0
    %v1754 = vsel %vm1722, 1, 0
    %v1755 = vsel %vm1723, 1, 0
    %v1756 = vsel %vm1724, 1, 0
    %v1757 = vsel %vm1725, 1, 0
    %v1758 = vsel %vm1726, 1, 0
    %v1759 = vsel %vm1727, 1, 0
    %v1760 = vcvt.s32.f32 %v1728
    %v1761 = vcvt.s32.f32 %v1729
    %v1762 = vcvt.s32.f32 %v1730
    %v1763 = vcvt.s32.f32 %v1731
    %v1764 = vcvt.s32.f32 %v1732
    %v1765 = vcvt.s32.f32 %v1733
    %v1766 = vcvt.s32.f32 %v1734
    %v1767 = vcvt.s32.f32 %v1735
    %v1768 = vcvt.s32.f32 %v1736
    %v1769 = vcvt.s32.f32 %v1737
    %v1770 = vcvt.s32.f32 %v1738
    %v1771 = vcvt.s32.f32 %v1739
    %v1772 = vcvt.s32.f32 %v1740
    %v1773 = vcvt.s32.f32 %v1741
    %v1774 = vcvt.s32.f32 %v1742
    %v1775 = vcvt.s32.f32 %v1743
    %v1776 = vcvt.s32.f32 %v1744
    %v1777 = vcvt.s32.f32 %v1745
    %v1778 = vcvt.s32.f32 %v1746
    %v1779 = vcvt.s32.f32 %v1747
    %v1780 = vcvt.s32.f32 %v1748
    %v1781 = vcvt.s32.f32 %v1749
    %v1782 = vcvt.s32.f32 %v1750
    %v1783 = vcvt.s32.f32 %v1751
    %v1784 = vcvt.s32.f32 %v1752
    %v1785 = vcvt.s32.f32 %v1753
    %v1786 = vcvt.s32.f32 %v1754
    %v1787 = vcvt.s32.f32 %v1755
    %v1788 = vcvt.s32.f32 %v1756
    %v1789 = vcvt.s32.f32 %v1757
    %v1790 = vcvt.s32.f32 %v1758
    %v1791 = vcvt.s32.f32 %v1759
    %v1792 = vld [vmem:[%s0] sm:$0xff]
    %v1794 = vsel %vm163, %v1760, 0
    %v1797 = vsel %vm163, %v1761, 0
    %v1800 = vsel %vm163, %v1762, 0
    %v1803 = vsel %vm163, %v1763, 0
    %v1806 = vsel %vm163, %v1764, 0
    %v1809 = vsel %vm163, %v1765, 0
    %v1812 = vsel %vm163, %v1766, 0
    %v1815 = vsel %vm163, %v1767, 0
    %v1818 = vsel %vm163, %v1768, 0
    %v1821 = vsel %vm163, %v1769, 0
    %v1824 = vsel %vm163, %v1770, 0
    %v1827 = vsel %vm163, %v1771, 0
    %v1830 = vsel %vm163, %v1772, 0
    %v1833 = vsel %vm163, %v1773, 0
    %v1836 = vsel %vm163, %v1774, 0
    %v1839 = vsel %vm163, %v1775, 0
    %v1842 = vsel %vm163, %v1776, 0
    %v1845 = vsel %vm163, %v1777, 0
    %v1848 = vsel %vm163, %v1778, 0
    %v1851 = vsel %vm163, %v1779, 0
    %v1854 = vsel %vm163, %v1780, 0
    %v1857 = vsel %vm163, %v1781, 0
    %v1860 = vsel %vm163, %v1782, 0
    %v1863 = vsel %vm163, %v1783, 0
    %v1866 = vsel %vm163, %v1784, 0
    %v1869 = vsel %vm163, %v1785, 0
    %v1872 = vsel %vm163, %v1786, 0
    %v1875 = vsel %vm163, %v1787, 0
    %v1878 = vsel %vm163, %v1788, 0
    %v1881 = vsel %vm163, %v1789, 0
    %v1884 = vsel %vm163, %v1790, 0
    %v1887 = vsel %vm163, %v1791, 0
    %1889 = vmatprep.subr.mxu0 0.0
    %1890 = vmatpush1.msra.mxu0 0.0
    %1891 = vmatprep.subr.mxu0 0.0
    %1892 = vmatpush1.msra.mxu0 0.0
    %1893 = vmatprep.subr.mxu0 0.0
    %1894 = vmatpush1.msra.mxu0 0.0
    %1895 = vmatprep.subr.mxu0 0.0
    %1896 = vmatpush1.msra.mxu0 0.0
    %1897 = vmatprep.subr.mxu0 0.0
    %1898 = vmatpush1.msra.mxu0 0.0
    %1899 = vmatprep.subr.mxu0 0.0
    %1900 = vmatpush1.msra.mxu0 0.0
    %1901 = vmatprep.subr.mxu0 0.0
    %1902 = vmatpush1.msra.mxu0 0.0
    %1903 = vmatprep.subr.mxu0 0.0
    %1904 = vmatpush1.msra.mxu0 0.0
    %1905 = vmatprep.subr.mxu0 0.0
    %1906 = vmatpush1.msra.mxu0 0.0
    %1907 = vmatprep.subr.mxu0 0.0
    %1908 = vmatpush1.msra.mxu0 0.0
    %1909 = vmatprep.subr.mxu0 0.0
    %1910 = vmatpush1.msra.mxu0 0.0
    %1911 = vmatprep.subr.mxu0 0.0
    %1912 = vmatpush1.msra.mxu0 0.0
    %1913 = vmatprep.subr.mxu0 0.0
    %1914 = vmatpush1.msra.mxu0 0.0
    %1915 = vmatprep.subr.mxu0 0.0
    %1916 = vmatpush1.msra.mxu0 0.0
    %1917 = vmatprep.subr.mxu0 0.0
    %1918 = vmatpush1.msra.mxu0 0.0
    %1919 = vmatprep.subr.mxu0 0.0
    %1920 = vmatpush1.msra.mxu0 %v1792
    %1921 = vmatprep.subr.mxu0 0.0
    %1922 = vmatpush2.msra.mxu0 0.0
    %1923 = vmatprep.subr.mxu0 0.0
    %1924 = vmatpush2.msra.mxu0 0.0
    %1925 = vmatprep.subr.mxu0 0.0
    %1926 = vmatpush2.msra.mxu0 0.0
    %1927 = vmatprep.subr.mxu0 0.0
    %1928 = vmatpush2.msra.mxu0 0.0
    %1929 = vmatprep.subr.mxu0 0.0
    %1930 = vmatpush2.msra.mxu0 0.0
    %1931 = vmatprep.subr.mxu0 0.0
    %1932 = vmatpush2.msra.mxu0 0.0
    %1933 = vmatprep.subr.mxu0 0.0
    %1934 = vmatpush2.msra.mxu0 0.0
    %1935 = vmatprep.subr.mxu0 0.0
    %1936 = vmatpush2.msra.mxu0 0.0
    %1937 = vmatprep.subr.mxu0 0.0
    %1938 = vmatpush2.msra.mxu0 0.0
    %1939 = vmatprep.subr.mxu0 0.0
    %1940 = vmatpush2.msra.mxu0 0.0
    %1941 = vmatprep.subr.mxu0 0.0
    %1942 = vmatpush2.msra.mxu0 0.0
    %1943 = vmatprep.subr.mxu0 0.0
    %1944 = vmatpush2.msra.mxu0 0.0
    %1945 = vmatprep.subr.mxu0 0.0
    %1946 = vmatpush2.msra.mxu0 0.0
    %1947 = vmatprep.subr.mxu0 0.0
    %1948 = vmatpush2.msra.mxu0 0.0
    %1949 = vmatprep.subr.mxu0 0.0
    %1950 = vmatpush2.msra.mxu0 0.0
    %1951 = vmatprep.subr.mxu0 0.0
    %1952 = vmatpush2.msra.mxu0 0.0
    %1953 = vmatprep.mubr.f32.mxu0 0.0
    %1954 = vmatmul.mubr.f32.gmra.mxu0 %v1794
    %v1955 = vpop.f32.mrf.mxu0
    %v1956 = vadd.f32 0.0, %v1955
    %v1957 = vpop.f32.mrf.mxu0
    %1958 = vmatprep.mubr.f32.mxu0 0.0
    %1959 = vmatmul.mubr.f32.gmra.mxu0 %v1797
    %v1960 = vpop.f32.mrf.mxu0
    %v1961 = vadd.f32 0.0, %v1960
    %v1962 = vpop.f32.mrf.mxu0
    %1963 = vmatprep.mubr.f32.mxu0 0.0
    %1964 = vmatmul.mubr.f32.gmra.mxu0 %v1800
    %v1965 = vpop.f32.mrf.mxu0
    %v1966 = vadd.f32 0.0, %v1965
    %v1967 = vpop.f32.mrf.mxu0
    %1968 = vmatprep.mubr.f32.mxu0 0.0
    %1969 = vmatmul.mubr.f32.gmra.mxu0 %v1803
    %v1970 = vpop.f32.mrf.mxu0
    %v1971 = vadd.f32 0.0, %v1970
    %v1972 = vpop.f32.mrf.mxu0
    %1973 = vmatprep.mubr.f32.mxu0 0.0
    %1974 = vmatmul.mubr.f32.gmra.mxu0 %v1806
    %v1975 = vpop.f32.mrf.mxu0
    %v1976 = vadd.f32 0.0, %v1975
    %v1977 = vpop.f32.mrf.mxu0
    %1978 = vmatprep.mubr.f32.mxu0 0.0
    %1979 = vmatmul.mubr.f32.gmra.mxu0 %v1809
    %v1980 = vpop.f32.mrf.mxu0
    %v1981 = vadd.f32 0.0, %v1980
    %v1982 = vpop.f32.mrf.mxu0
    %1983 = vmatprep.mubr.f32.mxu0 0.0
    %1984 = vmatmul.mubr.f32.gmra.mxu0 %v1812
    %v1985 = vpop.f32.mrf.mxu0
    %v1986 = vadd.f32 0.0, %v1985
    %v1987 = vpop.f32.mrf.mxu0
    %1988 = vmatprep.mubr.f32.mxu0 0.0
    %1989 = vmatmul.mubr.f32.gmra.mxu0 %v1815
    %v1990 = vpop.f32.mrf.mxu0
    %v1991 = vadd.f32 0.0, %v1990
    %v1992 = vpop.f32.mrf.mxu0
    %1993 = vmatprep.mubr.f32.mxu0 0.0
    %1994 = vmatmul.mubr.f32.gmra.mxu0 %v1818
    %v1995 = vpop.f32.mrf.mxu0
    %v1996 = vadd.f32 0.0, %v1995
    %v1997 = vpop.f32.mrf.mxu0
    %1998 = vmatprep.mubr.f32.mxu0 0.0
    %1999 = vmatmul.mubr.f32.gmra.mxu0 %v1821
    %v2000 = vpop.f32.mrf.mxu0
    %v2001 = vadd.f32 0.0, %v2000
    %v2002 = vpop.f32.mrf.mxu0
    %2003 = vmatprep.mubr.f32.mxu0 0.0
    %2004 = vmatmul.mubr.f32.gmra.mxu0 %v1824
    %v2005 = vpop.f32.mrf.mxu0
    %v2006 = vadd.f32 0.0, %v2005
    %v2007 = vpop.f32.mrf.mxu0
    %2008 = vmatprep.mubr.f32.mxu0 0.0
    %2009 = vmatmul.mubr.f32.gmra.mxu0 %v1827
    %v2010 = vpop.f32.mrf.mxu0
    %v2011 = vadd.f32 0.0, %v2010
    %v2012 = vpop.f32.mrf.mxu0
    %2013 = vmatprep.mubr.f32.mxu0 0.0
    %2014 = vmatmul.mubr.f32.gmra.mxu0 %v1830
    %v2015 = vpop.f32.mrf.mxu0
    %v2016 = vadd.f32 0.0, %v2015
    %v2017 = vpop.f32.mrf.mxu0
    %2018 = vmatprep.mubr.f32.mxu0 0.0
    %2019 = vmatmul.mubr.f32.gmra.mxu0 %v1833
    %v2020 = vpop.f32.mrf.mxu0
    %v2021 = vadd.f32 0.0, %v2020
    %v2022 = vpop.f32.mrf.mxu0
    %2023 = vmatprep.mubr.f32.mxu0 0.0
    %2024 = vmatmul.mubr.f32.gmra.mxu0 %v1836
    %v2025 = vpop.f32.mrf.mxu0
    %v2026 = vadd.f32 0.0, %v2025
    %v2027 = vpop.f32.mrf.mxu0
    %2028 = vmatprep.mubr.f32.mxu0 0.0
    %2029 = vmatmul.mubr.f32.gmra.mxu0 %v1839
    %v2030 = vpop.f32.mrf.mxu0
    %v2031 = vadd.f32 0.0, %v2030
    %v2032 = vpop.f32.mrf.mxu0
    %2033 = vmatprep.mubr.f32.mxu0 0.0
    %2034 = vmatmul.mubr.f32.gmra.mxu0 %v1842
    %v2035 = vpop.f32.mrf.mxu0
    %v2036 = vadd.f32 0.0, %v2035
    %v2037 = vpop.f32.mrf.mxu0
    %2038 = vmatprep.mubr.f32.mxu0 0.0
    %2039 = vmatmul.mubr.f32.gmra.mxu0 %v1845
    %v2040 = vpop.f32.mrf.mxu0
    %v2041 = vadd.f32 0.0, %v2040
    %v2042 = vpop.f32.mrf.mxu0
    %2043 = vmatprep.mubr.f32.mxu0 0.0
    %2044 = vmatmul.mubr.f32.gmra.mxu0 %v1848
    %v2045 = vpop.f32.mrf.mxu0
    %v2046 = vadd.f32 0.0, %v2045
    %v2047 = vpop.f32.mrf.mxu0
    %2048 = vmatprep.mubr.f32.mxu0 0.0
    %2049 = vmatmul.mubr.f32.gmra.mxu0 %v1851
    %v2050 = vpop.f32.mrf.mxu0
    %v2051 = vadd.f32 0.0, %v2050
    %v2052 = vpop.f32.mrf.mxu0
    %2053 = vmatprep.mubr.f32.mxu0 0.0
    %2054 = vmatmul.mubr.f32.gmra.mxu0 %v1854
    %v2055 = vpop.f32.mrf.mxu0
    %v2056 = vadd.f32 0.0, %v2055
    %v2057 = vpop.f32.mrf.mxu0
    %2058 = vmatprep.mubr.f32.mxu0 0.0
    %2059 = vmatmul.mubr.f32.gmra.mxu0 %v1857
    %v2060 = vpop.f32.mrf.mxu0
    %v2061 = vadd.f32 0.0, %v2060
    %v2062 = vpop.f32.mrf.mxu0
    %2063 = vmatprep.mubr.f32.mxu0 0.0
    %2064 = vmatmul.mubr.f32.gmra.mxu0 %v1860
    %v2065 = vpop.f32.mrf.mxu0
    %v2066 = vadd.f32 0.0, %v2065
    %v2067 = vpop.f32.mrf.mxu0
    %2068 = vmatprep.mubr.f32.mxu0 0.0
    %2069 = vmatmul.mubr.f32.gmra.mxu0 %v1863
    %v2070 = vpop.f32.mrf.mxu0
    %v2071 = vadd.f32 0.0, %v2070
    %v2072 = vpop.f32.mrf.mxu0
    %2073 = vmatprep.mubr.f32.mxu0 0.0
    %2074 = vmatmul.mubr.f32.gmra.mxu0 %v1866
    %v2075 = vpop.f32.mrf.mxu0
    %v2076 = vadd.f32 0.0, %v2075
    %v2077 = vpop.f32.mrf.mxu0
    %2078 = vmatprep.mubr.f32.mxu0 0.0
    %2079 = vmatmul.mubr.f32.gmra.mxu0 %v1869
    %v2080 = vpop.f32.mrf.mxu0
    %v2081 = vadd.f32 0.0, %v2080
    %v2082 = vpop.f32.mrf.mxu0
    %2083 = vmatprep.mubr.f32.mxu0 0.0
    %2084 = vmatmul.mubr.f32.gmra.mxu0 %v1872
    %v2085 = vpop.f32.mrf.mxu0
    %v2086 = vadd.f32 0.0, %v2085
    %v2087 = vpop.f32.mrf.mxu0
    %2088 = vmatprep.mubr.f32.mxu0 0.0
    %2089 = vmatmul.mubr.f32.gmra.mxu0 %v1875
    %v2090 = vpop.f32.mrf.mxu0
    %v2091 = vadd.f32 0.0, %v2090
    %v2092 = vpop.f32.mrf.mxu0
    %2093 = vmatprep.mubr.f32.mxu0 0.0
    %2094 = vmatmul.mubr.f32.gmra.mxu0 %v1878
    %v2095 = vpop.f32.mrf.mxu0
    %v2096 = vadd.f32 0.0, %v2095
    %v2097 = vpop.f32.mrf.mxu0
    %2098 = vmatprep.mubr.f32.mxu0 0.0
    %2099 = vmatmul.mubr.f32.gmra.mxu0 %v1881
    %v2100 = vpop.f32.mrf.mxu0
    %v2101 = vadd.f32 0.0, %v2100
    %v2102 = vpop.f32.mrf.mxu0
    %2103 = vmatprep.mubr.f32.mxu0 0.0
    %2104 = vmatmul.mubr.f32.gmra.mxu0 %v1884
    %v2105 = vpop.f32.mrf.mxu0
    %v2106 = vadd.f32 0.0, %v2105
    %v2107 = vpop.f32.mrf.mxu0
    %2108 = vmatprep.mubr.f32.mxu0 0.0
    %2109 = vmatmul.mubr.f32.gmra.mxu0 %v1887
    %v2110 = vpop.f32.mrf.mxu0
    %v2111 = vadd.f32 0.0, %v2110
    %v2112 = vpop.f32.mrf.mxu0
    %2113 = vdwg.mxu0
    %v2114 = vmul.f32 %v1956, %v1533
    %v2115 = vmul.f32 %v1961, %v1534
    %v2116 = vmul.f32 %v1966, %v1535
    %v2117 = vmul.f32 %v1971, %v1536
    %v2118 = vmul.f32 %v1976, %v1537
    %v2119 = vmul.f32 %v1981, %v1538
    %v2120 = vmul.f32 %v1986, %v1539
    %v2121 = vmul.f32 %v1991, %v1540
    %v2122 = vmul.f32 %v1996, %v1541
    %v2123 = vmul.f32 %v2001, %v1542
    %v2124 = vmul.f32 %v2006, %v1543
    %v2125 = vmul.f32 %v2011, %v1544
    %v2126 = vmul.f32 %v2016, %v1545
    %v2127 = vmul.f32 %v2021, %v1546
    %v2128 = vmul.f32 %v2026, %v1547
    %v2129 = vmul.f32 %v2031, %v1548
    %v2130 = vmul.f32 %v2036, %v1549
    %v2131 = vmul.f32 %v2041, %v1550
    %v2132 = vmul.f32 %v2046, %v1551
    %v2133 = vmul.f32 %v2051, %v1552
    %v2134 = vmul.f32 %v2056, %v1553
    %v2135 = vmul.f32 %v2061, %v1554
    %v2136 = vmul.f32 %v2066, %v1555
    %v2137 = vmul.f32 %v2071, %v1556
    %v2138 = vmul.f32 %v2076, %v1557
    %v2139 = vmul.f32 %v2081, %v1558
    %v2140 = vmul.f32 %v2086, %v1559
    %v2141 = vmul.f32 %v2091, %v1560
    %v2142 = vmul.f32 %v2096, %v1561
    %v2143 = vmul.f32 %v2101, %v1562
    %v2144 = vmul.f32 %v2106, %v1563
    %v2145 = vmul.f32 %v2111, %v1564
    %v2146 = vlaneseq
    %v2147 = vshrl.u32 %v2146, 7
    %v2148 = vlaneseq
    %v2149 = vshrl.u32 %v2148, 7
    %v2150 = vsub.s32 0, %v2149
    %v2151 = vrot.slane %v1597, %v2150
    %v2152 = vlaneseq
    %v2153 = vshrl.u32 %v2152, 7
    %v2154 = vsub.s32 1, %v2153
    %v2155 = vrot.slane %v1597, %v2154
    %vm2156 = vcmp.eq.s32.totalorder %v2147, %v2151
    %vm2157 = vcmp.eq.s32.totalorder %v2147, %v2155
    %v2158 = vsel %vm2156, 1, 0
    %v2159 = vsel %vm2157, 1, 0
    %v2160 = vcvt.s32.f32 %v2158
    %v2161 = vcvt.s32.f32 %v2159
    %v2162 = vld [vmem:[#allocation2] sm:$0xff]
    %2163 = vmatprep.subr.mxu0 0.0
    %2164 = vmatpush1.msra.mxu0 %v2129
    %2165 = vmatprep.subr.mxu0 0.0
    %2166 = vmatpush1.msra.mxu0 %v2128
    %2167 = vmatprep.subr.mxu0 0.0
    %2168 = vmatpush1.msra.mxu0 %v2127
    %2169 = vmatprep.subr.mxu0 0.0
    %2170 = vmatpush1.msra.mxu0 %v2126
    %2171 = vmatprep.subr.mxu0 0.0
    %2172 = vmatpush1.msra.mxu0 %v2125
    %2173 = vmatprep.subr.mxu0 0.0
    %2174 = vmatpush1.msra.mxu0 %v2124
    %2175 = vmatprep.subr.mxu0 0.0
    %2176 = vmatpush1.msra.mxu0 %v2123
    %2177 = vmatprep.subr.mxu0 0.0
    %2178 = vmatpush1.msra.mxu0 %v2122
    %2179 = vmatprep.subr.mxu0 0.0
    %2180 = vmatpush1.msra.mxu0 %v2121
    %2181 = vmatprep.subr.mxu0 0.0
    %2182 = vmatpush1.msra.mxu0 %v2120
    %2183 = vmatprep.subr.mxu0 0.0
    %2184 = vmatpush1.msra.mxu0 %v2119
    %2185 = vmatprep.subr.mxu0 0.0
    %2186 = vmatpush1.msra.mxu0 %v2118
    %2187 = vmatprep.subr.mxu0 0.0
    %2188 = vmatpush1.msra.mxu0 %v2117
    %2189 = vmatprep.subr.mxu0 0.0
    %2190 = vmatpush1.msra.mxu0 %v2116
    %2191 = vmatprep.subr.mxu0 0.0
    %2192 = vmatpush1.msra.mxu0 %v2115
    %2193 = vmatprep.subr.mxu0 0.0
    %2194 = vmatpush1.msra.mxu0 %v2114
    %2195 = vmatprep.subr.mxu0 0.0
    %2196 = vmatpush2.msra.mxu0 %v2145
    %2197 = vmatprep.subr.mxu0 0.0
    %2198 = vmatpush2.msra.mxu0 %v2144
    %2199 = vmatprep.subr.mxu0 0.0
    %2200 = vmatpush2.msra.mxu0 %v2143
    %2201 = vmatprep.subr.mxu0 0.0
    %2202 = vmatpush2.msra.mxu0 %v2142
    %2203 = vmatprep.subr.mxu0 0.0
    %2204 = vmatpush2.msra.mxu0 %v2141
    %2205 = vmatprep.subr.mxu0 0.0
    %2206 = vmatpush2.msra.mxu0 %v2140
    %2207 = vmatprep.subr.mxu0 0.0
    %2208 = vmatpush2.msra.mxu0 %v2139
    %2209 = vmatprep.subr.mxu0 0.0
    %2210 = vmatpush2.msra.mxu0 %v2138
    %2211 = vmatprep.subr.mxu0 0.0
    %2212 = vmatpush2.msra.mxu0 %v2137
    %2213 = vmatprep.subr.mxu0 0.0
    %2214 = vmatpush2.msra.mxu0 %v2136
    %2215 = vmatprep.subr.mxu0 0.0
    %2216 = vmatpush2.msra.mxu0 %v2135
    %2217 = vmatprep.subr.mxu0 0.0
    %2218 = vmatpush2.msra.mxu0 %v2134
    %2219 = vmatprep.subr.mxu0 0.0
    %2220 = vmatpush2.msra.mxu0 %v2133
    %2221 = vmatprep.subr.mxu0 0.0
    %2222 = vmatpush2.msra.mxu0 %v2132
    %2223 = vmatprep.subr.mxu0 0.0
    %2224 = vmatpush2.msra.mxu0 %v2131
    %2225 = vmatprep.subr.mxu0 0.0
    %2226 = vmatpush2.msra.mxu0 %v2130
    %2227 = vmatprep.mubr.f32.mxu0 %v2161
    %2228 = vmatmul.mubr.f32.gmra.mxu0 %v2160
    %v2229 = vpop.f32.mrf.mxu0
    %v2230 = vadd.f32 0.0, %v2229
    %v2231 = vpop.f32.mrf.mxu0
    %2232 = vdwg.mxu0
    %v2233 = vadd.f32 %v2162, %v2230
    %2234 = vst [vmem:[#allocation2] sm:$0xff] %v2233
    // Predicated region
    $region42: #{tpu_custom_call.1} parent=1 // pred_check
      _
    $region43: #{tpu_custom_call.1} parent=1 // pred_check_branch
      %2236 = sbr.rel (0) target = $region45
    $region44: #{tpu_custom_call.1} parent=1 // pred_region
      %s2238 = ssub.s32 128, 128
      %2239 = vsyncadd [#allocation3], %s2238
      %s2241 = sshll.u32 [#allocation2], 4
      %s2242 = int_to_ptr.vmem [resolvable:$true] %s2241
      %2244 = dma.vmem_to_hbm [thread:$0]  %s2242, 128, %s9, [#allocation3]
    $region45: #{tpu_custom_call.1} parent=1 // pred_fallthru
      _
    // Predicated region
    $region46: #{tpu_custom_call.1} parent=1 // pred_check
      _
    $region47: #{tpu_custom_call.1} parent=1 // pred_check_branch
      %2246 = sbr.rel (0) target = $region49
    $region48: #{tpu_custom_call.1} parent=1 // pred_region
      %2247 = dma.done [#allocation3], 128
    $region49: #{tpu_custom_call.1} parent=1 // pred_fallthru
      _
    %2248 = vsyncpa [#allocation3], 1

</llo_original>
